<compile_context>
chip_gen: v7x
topology: tpu7x:2x2x1
jax: 0.10.0
libtpu: 0.0.40
codegen_flags: <defaults>
</compile_context>

<pallas_src>
import functools

import jax
import jax.numpy as jnp
from jax.experimental import pallas as pl
from jax.experimental.pallas import tpu as pltpu

IN_CHANNELS = 448
# Logical layer dims (as in the PyTorch module).
LAYER_DIMS = [(IN_CHANNELS, 256), (256, 128), (128, 64), (64, 32), (32, 1)]
# Lane-padded dims used by the kernel (zero padding is exact through ReLU:
# padded inputs are 0, padded weight rows/cols are 0, padded biases are 0).
PADDED_LAYER_DIMS = [(IN_CHANNELS, 256), (256, 128), (128, 128), (128, 128), (128, 128)]
OUT_W = 8  # narrow output slab: 32 B/row instead of 512 B/row; real result is column 0


def _mlp_kernel(x_ref,
                w0_ref, b0_ref,
                w1_ref, b1_ref,
                w2_ref, b2_ref,
                w3_ref, b3_ref,
                w4_ref, b4_ref,
                o_ref):
    # Cast the f32 x tile to bf16 in-kernel (single f32 HBM stream, no separate
    # wrapper-side convert pass).  All matmuls: bf16 operands on the MXU with
    # f32 accumulation; bias-add / ReLU on the VPU in f32.
    x = x_ref[...].astype(jnp.bfloat16)

    h = jnp.dot(x, w0_ref[...], preferred_element_type=jnp.float32) + b0_ref[...]
    h = jnp.maximum(h, 0.0)

    h = jnp.dot(h.astype(jnp.bfloat16), w1_ref[...],
                preferred_element_type=jnp.float32) + b1_ref[...]
    h = jnp.maximum(h, 0.0)

    h = jnp.dot(h.astype(jnp.bfloat16), w2_ref[...],
                preferred_element_type=jnp.float32) + b2_ref[...]
    h = jnp.maximum(h, 0.0)

    h = jnp.dot(h.astype(jnp.bfloat16), w3_ref[...],
                preferred_element_type=jnp.float32) + b3_ref[...]
    h = jnp.maximum(h, 0.0)

    h = jnp.dot(h.astype(jnp.bfloat16), w4_ref[...],
                preferred_element_type=jnp.float32) + b4_ref[...]

    # Columns 1..127 of layer 4 are zero-padded, so only column 0 is real;
    # write just an 8-lane slab to minimize HBM writeback.
    o_ref[...] = h[:, :OUT_W].astype(o_ref.dtype)


def prepare_params(params):
    """Cast weights to bf16, zero-pad the narrow tail layers to 128 lanes.

    Called once, outside jit (avoids re-padding / constant folding per call).
    """
    flat = []
    for (fin, fout), (fin_p, fout_p), (w, b) in zip(LAYER_DIMS, PADDED_LAYER_DIMS, params):
        w = jnp.asarray(w, jnp.float32)
        b = jnp.asarray(b, jnp.float32).reshape(1, fout)
        wp = jnp.zeros((fin_p, fout_p), jnp.bfloat16).at[:fin, :fout].set(
            w.astype(jnp.bfloat16))
        bp = jnp.zeros((1, fout_p), jnp.float32).at[:, :fout].set(b)
        flat += [wp, bp]
    return tuple(flat)


def _round_up(x, m):
    return ((x + m - 1) // m) * m


def _pick_block_b(batch, block_b):
    """Pick the effective batch tile: multiple of 128, <= padded batch, and
    small enough that the grid has >=2 steps when the batch allows it
    (keeps both v7x TensorCores busy via the 'parallel' axis)."""
    b128 = max(_round_up(batch, 128), 128)
    blk = min(block_b, b128)
    if b128 >= 256:
        blk = min(blk, _round_up(b128 // 2, 128))
    return max(_round_up(blk, 128), 128)


@functools.partial(jax.jit, static_argnames=("block_b",))
def model_2_forward(x, flat_params, block_b=2048):
    """x: (B, 448) float32 -> (B, 1) float32."""
    B, in_feat = x.shape
    assert in_feat == IN_CHANNELS
    assert block_b % 128 == 0, "block_b must be a multiple of 128"

    blk = _pick_block_b(B, block_b)
    B_pad = _round_up(B, blk)

    x = x.astype(jnp.float32)
    if B_pad != B:
        x = jnp.pad(x, ((0, B_pad - B), (0, 0)))

    grid = (B_pad // blk,)

    # x tiled along batch (f32, cast in-kernel); weights / biases replicated
    # (constant block index -> stay resident in VMEM across grid steps).
    in_specs = [pl.BlockSpec((blk, IN_CHANNELS), lambda i: (i, 0))]
    for (fin_p, fout_p) in PADDED_LAYER_DIMS:
        in_specs.append(pl.BlockSpec((fin_p, fout_p), lambda i: (0, 0)))
        in_specs.append(pl.BlockSpec((1, fout_p), lambda i: (0, 0)))

    out_specs = pl.BlockSpec((blk, OUT_W), lambda i: (i, 0))

    weight_bytes = sum(fin_p * fout_p * 2 + fout_p * 4
                       for fin_p, fout_p in PADDED_LAYER_DIMS)
    flops = 2 * B_pad * sum(fin_p * fout_p for fin_p, fout_p in PADDED_LAYER_DIMS)
    bytes_accessed = (B_pad * IN_CHANNELS * 4     # f32 input stream
                      + weight_bytes              # resident weights (read once)
                      + B_pad * OUT_W * 4)        # narrow f32 output

    # Explicit VMEM limit so large block_b also clears v5e's 16 MiB default
    # scoped limit; stays within every generation's physical VMEM.
    vmem_need = (2 * blk * IN_CHANNELS * 4        # double-buffered x tile
                 + 2 * blk * OUT_W * 4            # double-buffered out tile
                 + 2 * weight_bytes               # weights (+ double buffer slack)
                 + (2 << 20))                     # headroom
    vmem_limit = int(min(max(vmem_need, 32 * 1024 * 1024), 60 * 1024 * 1024))

    out_padded = pl.pallas_call(
        _mlp_kernel,
        out_shape=jax.ShapeDtypeStruct((B_pad, OUT_W), jnp.float32),
        grid_spec=pltpu.PrefetchScalarGridSpec(
            num_scalar_prefetch=0,
            grid=grid,
            in_specs=in_specs,
            out_specs=out_specs,
        ),
        compiler_params=pltpu.CompilerParams(
            dimension_semantics=("parallel",),
            vmem_limit_bytes=vmem_limit,
        ),
        cost_estimate=pl.CostEstimate(
            flops=flops,
            transcendentals=0,
            bytes_accessed=bytes_accessed,
        ),
    )(x, *flat_params)

    return out_padded[:B, :1]


def init_params(key):
    """Deterministic init mimicking PyTorch's default Linear init:
    U(-1/sqrt(fan_in), 1/sqrt(fan_in)) for both weight and bias."""
    params = []
    for (fin, fout) in LAYER_DIMS:
        key, kw, kb = jax.random.split(key, 3)
        bound = 1.0 / jnp.sqrt(float(fin))
        w = jax.random.uniform(kw, (fin, fout), jnp.float32, -bound, bound)
        b = jax.random.uniform(kb, (1, fout), jnp.float32, -bound, bound)
        params.append((w, b))
    return params


def reference_forward(x, params):
    """Pure-JAX f32 reference matching the PyTorch module semantics."""
    h = x
    for i, (w, b) in enumerate(params):
        h = h @ w + b
        if i < len(params) - 1:
            h = jnp.maximum(h, 0.0)
    return h


if __name__ == "__main__":
    key = jax.random.PRNGKey(0)
    key, kx = jax.random.split(key)

    B = 8  # small batch for the correctness check (gets padded to one 128-row tile)
    x = jax.random.normal(kx, (B, IN_CHANNELS), jnp.float32)

    params = init_params(key)
    flat_params = prepare_params(params)  # padded + bf16, done once outside jit

    out = model_2_forward(x, flat_params)
    out = jax.block_until_ready(out)

    ref = reference_forward(x, params)
    assert out.shape == (B, 1), out.shape
    # bf16 operands (f32 accumulation) vs f32 reference -> loose tolerance.
    max_err = float(jnp.max(jnp.abs(out - ref)))
    assert jnp.allclose(out, ref, atol=5e-2, rtol=5e-2), ("mismatch vs reference", max_err)

    print("KERNEL_OK")
</pallas_src>

<mosaic_0001>
module attributes {stable_mosaic.version = 11 : i64} {
  func.func @_mlp_kernel(%arg0: i32, %arg1: memref<128x448xf32, #tpu.memory_space<vmem>>, %arg2: memref<448x256xbf16, #tpu.memory_space<vmem>>, %arg3: memref<1x256xf32, #tpu.memory_space<vmem>>, %arg4: memref<256x128xbf16, #tpu.memory_space<vmem>>, %arg5: memref<1x128xf32, #tpu.memory_space<vmem>>, %arg6: memref<128x128xbf16, #tpu.memory_space<vmem>>, %arg7: memref<1x128xf32, #tpu.memory_space<vmem>>, %arg8: memref<128x128xbf16, #tpu.memory_space<vmem>>, %arg9: memref<1x128xf32, #tpu.memory_space<vmem>>, %arg10: memref<128x128xbf16, #tpu.memory_space<vmem>>, %arg11: memref<1x128xf32, #tpu.memory_space<vmem>>, %arg12: memref<128x8xf32, #tpu.memory_space<vmem>>) attributes {dimension_semantics = [#tpu.dimension_semantics<parallel>], iteration_bounds = array<i64: 1>, scalar_prefetch = 0 : i64, scratch_operands = 0 : i64, tpu.core_type = #tpu.core_type<tc>, window_params = [{transform_indices = @transform_0, window_bounds = array<i64: 128, 448>}, {pipeline_mode = #tpu.pipeline_mode<synchronous>, transform_indices = @transform_1, window_bounds = array<i64: 448, 256>}, {pipeline_mode = #tpu.pipeline_mode<synchronous>, transform_indices = @transform_2, window_bounds = array<i64: 1, 256>}, {pipeline_mode = #tpu.pipeline_mode<synchronous>, transform_indices = @transform_3, window_bounds = array<i64: 256, 128>}, {pipeline_mode = #tpu.pipeline_mode<synchronous>, transform_indices = @transform_4, window_bounds = array<i64: 1, 128>}, {pipeline_mode = #tpu.pipeline_mode<synchronous>, transform_indices = @transform_5, window_bounds = array<i64: 128, 128>}, {pipeline_mode = #tpu.pipeline_mode<synchronous>, transform_indices = @transform_6, window_bounds = array<i64: 1, 128>}, {pipeline_mode = #tpu.pipeline_mode<synchronous>, transform_indices = @transform_7, window_bounds = array<i64: 128, 128>}, {pipeline_mode = #tpu.pipeline_mode<synchronous>, transform_indices = @transform_8, window_bounds = array<i64: 1, 128>}, {pipeline_mode = #tpu.pipeline_mode<synchronous>, transform_indices = @transform_9, window_bounds = array<i64: 128, 128>}, {pipeline_mode = #tpu.pipeline_mode<synchronous>, transform_indices = @transform_10, window_bounds = array<i64: 1, 128>}, {transform_indices = @transform_11, window_bounds = array<i64: 128, 8>}]} {
    %c0 = arith.constant 0 : index
    %c0_0 = arith.constant 0 : index
    %0 = vector.load %arg1[%c0, %c0_0] : memref<128x448xf32, #tpu.memory_space<vmem>>, vector<128x448xf32>
    %1 = arith.truncf %0 : vector<128x448xf32> to vector<128x448xbf16>
    %c0_1 = arith.constant 0 : index
    %c0_2 = arith.constant 0 : index
    %2 = vector.load %arg2[%c0_1, %c0_2] : memref<448x256xbf16, #tpu.memory_space<vmem>>, vector<448x256xbf16>
    %cst = arith.constant dense<0.000000e+00> : vector<128x256xf32>
    %3 = tpu.matmul %1, %2, %cst {dimension_numbers = #tpu.dot_dimension_numbers<[1], [0], [0], [1], [0, 0, 1, 1], [], []>} : vector<128x448xbf16>, vector<448x256xbf16>, vector<128x256xf32> -> vector<128x256xf32>
    %c0_3 = arith.constant 0 : index
    %c0_4 = arith.constant 0 : index
    %4 = vector.load %arg3[%c0_3, %c0_4] : memref<1x256xf32, #tpu.memory_space<vmem>>, vector<1x256xf32>
    %5 = vector.broadcast %4 : vector<1x256xf32> to vector<128x256xf32>
    %6 = arith.addf %3, %5 : vector<128x256xf32>
    %cst_5 = arith.constant 0.000000e+00 : f32
    %7 = vector.broadcast %cst_5 : f32 to vector<128x256xf32>
    %8 = arith.maximumf %6, %7 : vector<128x256xf32>
    %9 = arith.truncf %8 : vector<128x256xf32> to vector<128x256xbf16>
    %c0_6 = arith.constant 0 : index
    %c0_7 = arith.constant 0 : index
    %10 = vector.load %arg4[%c0_6, %c0_7] : memref<256x128xbf16, #tpu.memory_space<vmem>>, vector<256x128xbf16>
    %cst_8 = arith.constant dense<0.000000e+00> : vector<128x128xf32>
    %11 = tpu.matmul %9, %10, %cst_8 {dimension_numbers = #tpu.dot_dimension_numbers<[1], [0], [0], [1], [0, 0, 1, 1], [], []>} : vector<128x256xbf16>, vector<256x128xbf16>, vector<128x128xf32> -> vector<128x128xf32>
    %c0_9 = arith.constant 0 : index
    %c0_10 = arith.constant 0 : index
    %12 = vector.load %arg5[%c0_9, %c0_10] : memref<1x128xf32, #tpu.memory_space<vmem>>, vector<1x128xf32>
    %13 = vector.broadcast %12 : vector<1x128xf32> to vector<128x128xf32>
    %14 = arith.addf %11, %13 : vector<128x128xf32>
    %cst_11 = arith.constant 0.000000e+00 : f32
    %15 = vector.broadcast %cst_11 : f32 to vector<128x128xf32>
    %16 = arith.maximumf %14, %15 : vector<128x128xf32>
    %17 = arith.truncf %16 : vector<128x128xf32> to vector<128x128xbf16>
    %c0_12 = arith.constant 0 : index
    %c0_13 = arith.constant 0 : index
    %18 = vector.load %arg6[%c0_12, %c0_13] : memref<128x128xbf16, #tpu.memory_space<vmem>>, vector<128x128xbf16>
    %cst_14 = arith.constant dense<0.000000e+00> : vector<128x128xf32>
    %19 = tpu.matmul %17, %18, %cst_14 {dimension_numbers = #tpu.dot_dimension_numbers<[1], [0], [0], [1], [0, 0, 1, 1], [], []>} : vector<128x128xbf16>, vector<128x128xbf16>, vector<128x128xf32> -> vector<128x128xf32>
    %c0_15 = arith.constant 0 : index
    %c0_16 = arith.constant 0 : index
    %20 = vector.load %arg7[%c0_15, %c0_16] : memref<1x128xf32, #tpu.memory_space<vmem>>, vector<1x128xf32>
    %21 = vector.broadcast %20 : vector<1x128xf32> to vector<128x128xf32>
    %22 = arith.addf %19, %21 : vector<128x128xf32>
    %cst_17 = arith.constant 0.000000e+00 : f32
    %23 = vector.broadcast %cst_17 : f32 to vector<128x128xf32>
    %24 = arith.maximumf %22, %23 : vector<128x128xf32>
    %25 = arith.truncf %24 : vector<128x128xf32> to vector<128x128xbf16>
    %c0_18 = arith.constant 0 : index
    %c0_19 = arith.constant 0 : index
    %26 = vector.load %arg8[%c0_18, %c0_19] : memref<128x128xbf16, #tpu.memory_space<vmem>>, vector<128x128xbf16>
    %cst_20 = arith.constant dense<0.000000e+00> : vector<128x128xf32>
    %27 = tpu.matmul %25, %26, %cst_20 {dimension_numbers = #tpu.dot_dimension_numbers<[1], [0], [0], [1], [0, 0, 1, 1], [], []>} : vector<128x128xbf16>, vector<128x128xbf16>, vector<128x128xf32> -> vector<128x128xf32>
    %c0_21 = arith.constant 0 : index
    %c0_22 = arith.constant 0 : index
    %28 = vector.load %arg9[%c0_21, %c0_22] : memref<1x128xf32, #tpu.memory_space<vmem>>, vector<1x128xf32>
    %29 = vector.broadcast %28 : vector<1x128xf32> to vector<128x128xf32>
    %30 = arith.addf %27, %29 : vector<128x128xf32>
    %cst_23 = arith.constant 0.000000e+00 : f32
    %31 = vector.broadcast %cst_23 : f32 to vector<128x128xf32>
    %32 = arith.maximumf %30, %31 : vector<128x128xf32>
    %33 = arith.truncf %32 : vector<128x128xf32> to vector<128x128xbf16>
    %c0_24 = arith.constant 0 : index
    %c0_25 = arith.constant 0 : index
    %34 = vector.load %arg10[%c0_24, %c0_25] : memref<128x128xbf16, #tpu.memory_space<vmem>>, vector<128x128xbf16>
    %cst_26 = arith.constant dense<0.000000e+00> : vector<128x128xf32>
    %35 = tpu.matmul %33, %34, %cst_26 {dimension_numbers = #tpu.dot_dimension_numbers<[1], [0], [0], [1], [0, 0, 1, 1], [], []>} : vector<128x128xbf16>, vector<128x128xbf16>, vector<128x128xf32> -> vector<128x128xf32>
    %c0_27 = arith.constant 0 : index
    %c0_28 = arith.constant 0 : index
    %36 = vector.load %arg11[%c0_27, %c0_28] : memref<1x128xf32, #tpu.memory_space<vmem>>, vector<1x128xf32>
    %37 = vector.broadcast %36 : vector<1x128xf32> to vector<128x128xf32>
    %38 = arith.addf %35, %37 : vector<128x128xf32>
    %39 = vector.extract_strided_slice %38 {offsets = [0, 0], sizes = [128, 8], strides = [1, 1]} : vector<128x128xf32> to vector<128x8xf32>
    %c0_29 = arith.constant 0 : index
    %c0_30 = arith.constant 0 : index
    %40 = vector.load %arg12[%c0_29, %c0_30] : memref<128x8xf32, #tpu.memory_space<vmem>>, vector<128x8xf32>
    tpu.vector_store %arg12[%c0_29, %c0_30], %39 {strides = array<i32>} : memref<128x8xf32, #tpu.memory_space<vmem>>, vector<128x8xf32>,
    return
  }
  func.func @transform_0(%arg0: i32) -> (i32, i32) {
    %c0_i32 = arith.constant 0 : i32
    %c0_i32_0 = arith.constant 0 : i32
    return %arg0, %c0_i32 : i32, i32
  }
  func.func @transform_1(%arg0: i32) -> (i32, i32) {
    %c0_i32 = arith.constant 0 : i32
    %c0_i32_0 = arith.constant 0 : i32
    %c0_i32_1 = arith.constant 0 : i32
    return %c0_i32, %c0_i32_0 : i32, i32
  }
  func.func @transform_2(%arg0: i32) -> (i32, i32) {
    %c0_i32 = arith.constant 0 : i32
    %c0_i32_0 = arith.constant 0 : i32
    %c0_i32_1 = arith.constant 0 : i32
    return %c0_i32, %c0_i32_0 : i32, i32
  }
  func.func @transform_3(%arg0: i32) -> (i32, i32) {
    %c0_i32 = arith.constant 0 : i32
    %c0_i32_0 = arith.constant 0 : i32
    %c0_i32_1 = arith.constant 0 : i32
    return %c0_i32, %c0_i32_0 : i32, i32
  }
  func.func @transform_4(%arg0: i32) -> (i32, i32) {
    %c0_i32 = arith.constant 0 : i32
    %c0_i32_0 = arith.constant 0 : i32
    %c0_i32_1 = arith.constant 0 : i32
    return %c0_i32, %c0_i32_0 : i32, i32
  }
  func.func @transform_5(%arg0: i32) -> (i32, i32) {
    %c0_i32 = arith.constant 0 : i32
    %c0_i32_0 = arith.constant 0 : i32
    %c0_i32_1 = arith.constant 0 : i32
    return %c0_i32, %c0_i32_0 : i32, i32
  }
  func.func @transform_6(%arg0: i32) -> (i32, i32) {
    %c0_i32 = arith.constant 0 : i32
    %c0_i32_0 = arith.constant 0 : i32
    %c0_i32_1 = arith.constant 0 : i32
    return %c0_i32, %c0_i32_0 : i32, i32
  }
  func.func @transform_7(%arg0: i32) -> (i32, i32) {
    %c0_i32 = arith.constant 0 : i32
    %c0_i32_0 = arith.constant 0 : i32
    %c0_i32_1 = arith.constant 0 : i32
    return %c0_i32, %c0_i32_0 : i32, i32
  }
  func.func @transform_8(%arg0: i32) -> (i32, i32) {
    %c0_i32 = arith.constant 0 : i32
    %c0_i32_0 = arith.constant 0 : i32
    %c0_i32_1 = arith.constant 0 : i32
    return %c0_i32, %c0_i32_0 : i32, i32
  }
  func.func @transform_9(%arg0: i32) -> (i32, i32) {
    %c0_i32 = arith.constant 0 : i32
    %c0_i32_0 = arith.constant 0 : i32
    %c0_i32_1 = arith.constant 0 : i32
    return %c0_i32, %c0_i32_0 : i32, i32
  }
  func.func @transform_10(%arg0: i32) -> (i32, i32) {
    %c0_i32 = arith.constant 0 : i32
    %c0_i32_0 = arith.constant 0 : i32
    %c0_i32_1 = arith.constant 0 : i32
    return %c0_i32, %c0_i32_0 : i32, i32
  }
  func.func @transform_11(%arg0: i32) -> (i32, i32) {
    %c0_i32 = arith.constant 0 : i32
    %c0_i32_0 = arith.constant 0 : i32
    return %arg0, %c0_i32 : i32, i32
  }
}

</mosaic_0001>

<llo_original>
// kernel: model_2_forward.1
$region0: #{model_2_forward.1}
  #allocation0 [shape = 'u32[]', space=smem, size = 0x4, offset = 0x4, fixed_abs, tag = 'smem constant byte address 0x4 - core index']
  #allocation1 [shape = 'u32[144,128]{1,0:T(1,128)}', space=vmem, size = 0x12000, scoped, tag = 'internal scratch']
  %s0 = inlined_call_operand.vmem [shape: f32[128,448], index: 0, kind: input, shape index: {}]
  %s1 = inlined_call_operand.vmem [shape: bf16[448,256], index: 1, kind: input, shape index: {}]
  %s2 = inlined_call_operand.vmem [shape: f32[1,256], index: 2, kind: input, shape index: {}]
  %s3 = inlined_call_operand.hbm [shape: bf16[256,128], index: 3, kind: input, shape index: {}]
  %s4 = inlined_call_operand.vmem [shape: f32[1,128], index: 4, kind: input, shape index: {}]
  %s5 = inlined_call_operand.vmem [shape: bf16[128,128], index: 5, kind: input, shape index: {}]
  %s6 = inlined_call_operand.vmem [shape: f32[1,128], index: 6, kind: input, shape index: {}]
  %s7 = inlined_call_operand.hbm [shape: bf16[128,128], index: 7, kind: input, shape index: {}]
  %s8 = inlined_call_operand.vmem [shape: f32[1,128], index: 8, kind: input, shape index: {}]
  %s9 = inlined_call_operand.hbm [shape: bf16[128,128], index: 9, kind: input, shape index: {}]
  %s10 = inlined_call_operand.vmem [shape: f32[1,128], index: 10, kind: input, shape index: {}]
  %s11 = inlined_call_operand.vmem [shape: f32[128,8], index: 11, kind: output, shape index: {}]
  %s12 = sld [smem:[#allocation0]]
  $region66: #{model_2_forward.1} parent=0
    _
  %s14 = ssub.s32 1, %s12
  %s15 = scalar_select 0, %s14, %s12
  $region1: #{model_2_forward.1} parent=0
    #allocation2 [shape = 'u8[65536]{0}', space=vmem, size = 0x10000, scoped, tag = 'input window, operand 3, single buffered']
    #allocation3 [shape = 's32[1]{0}', space=sflag, size = 0x4, scoped, tag = 'scoped memory for model_2_forward.1']
    #allocation4 [shape = 'u8[32768]{0}', space=vmem, size = 0x8000, scoped, tag = 'input window, operand 7, single buffered']
    #allocation5 [shape = 's32[1]{0}', space=sflag, size = 0x4, scoped, tag = 'scoped memory for model_2_forward.1']
    #allocation6 [shape = 'u8[32768]{0}', space=vmem, size = 0x8000, scoped, tag = 'input window, operand 9, single buffered']
    %16 = vsyncpa [#allocation3], 0
    %17 = vsyncpa [#allocation5], 0
    // Predicated region
    $region2: #{model_2_forward.1} parent=1 // pred_check
      _
    $region3: #{model_2_forward.1} parent=1 // pred_check_branch
      %19 = sbr.rel (0) target = $region5
    $region4: #{model_2_forward.1} parent=1 // pred_region
      _
    $region5: #{model_2_forward.1} parent=1 // pred_fallthru
      _
    // Predicated region
    $region6: #{model_2_forward.1} parent=1 // pred_check
      _
    $region7: #{model_2_forward.1} parent=1 // pred_check_branch
      %21 = sbr.rel (0) target = $region9
    $region8: #{model_2_forward.1} parent=1 // pred_region
      _
    $region9: #{model_2_forward.1} parent=1 // pred_fallthru
      _
    // Predicated region
    $region10: #{model_2_forward.1} parent=1 // pred_check
      _
    $region11: #{model_2_forward.1} parent=1 // pred_check_branch
      %23 = sbr.rel (0) target = $region13
    $region12: #{model_2_forward.1} parent=1 // pred_region
      _
    $region13: #{model_2_forward.1} parent=1 // pred_fallthru
      _
    // Predicated region
    $region14: #{model_2_forward.1} parent=1 // pred_check
      _
    $region15: #{model_2_forward.1} parent=1 // pred_check_branch
      %25 = sbr.rel (0) target = $region17
    $region16: #{model_2_forward.1} parent=1 // pred_region
      %s27 = ssub.s32 2048, 2048
      %28 = vsyncadd [#allocation3], %s27
      %s29 = sshll.u32 [#allocation2], 4
      %s30 = int_to_ptr.vmem [resolvable:$true] %s29
      %35 = dma.hbm_to_vmem [thread:$0]  %s3, 2048, %s30, [#allocation3], 64, 64, 4
    $region17: #{model_2_forward.1} parent=1 // pred_fallthru
      _
    // Predicated region
    $region18: #{model_2_forward.1} parent=1 // pred_check
      _
    $region19: #{model_2_forward.1} parent=1 // pred_check_branch
      %37 = sbr.rel (0) target = $region21
    $region20: #{model_2_forward.1} parent=1 // pred_region
      _
    $region21: #{model_2_forward.1} parent=1 // pred_fallthru
      _
    // Predicated region
    $region22: #{model_2_forward.1} parent=1 // pred_check
      _
    $region23: #{model_2_forward.1} parent=1 // pred_check_branch
      %39 = sbr.rel (0) target = $region25
    $region24: #{model_2_forward.1} parent=1 // pred_region
      _
    $region25: #{model_2_forward.1} parent=1 // pred_fallthru
      _
    // Predicated region
    $region26: #{model_2_forward.1} parent=1 // pred_check
      _
    $region27: #{model_2_forward.1} parent=1 // pred_check_branch
      %41 = sbr.rel (0) target = $region29
    $region28: #{model_2_forward.1} parent=1 // pred_region
      _
    $region29: #{model_2_forward.1} parent=1 // pred_fallthru
      _
    // Predicated region
    $region30: #{model_2_forward.1} parent=1 // pred_check
      _
    $region31: #{model_2_forward.1} parent=1 // pred_check_branch
      %43 = sbr.rel (0) target = $region33
    $region32: #{model_2_forward.1} parent=1 // pred_region
      %s45 = ssub.s32 1024, 1024
      %46 = vsyncadd [#allocation5], %s45
      %s47 = sshll.u32 [#allocation4], 4
      %s48 = int_to_ptr.vmem [resolvable:$true] %s47
      %53 = dma.hbm_to_vmem [thread:$0]  %s7, 1024, %s48, [#allocation5], 64, 64, 4
    $region33: #{model_2_forward.1} parent=1 // pred_fallthru
      _
    // Predicated region
    $region34: #{model_2_forward.1} parent=1 // pred_check
      _
    $region35: #{model_2_forward.1} parent=1 // pred_check_branch
      %55 = sbr.rel (0) target = $region37
    $region36: #{model_2_forward.1} parent=1 // pred_region
      _
    $region37: #{model_2_forward.1} parent=1 // pred_fallthru
      _
    // Predicated region
    $region38: #{model_2_forward.1} parent=1 // pred_check
      _
    $region39: #{model_2_forward.1} parent=1 // pred_check_branch
      %57 = sbr.rel (0) target = $region41
    $region40: #{model_2_forward.1} parent=1 // pred_region
      %s59 = ssub.s32 1024, 1024
      %60 = vsyncadd [#allocation5], %s59
      %s61 = sshll.u32 [#allocation6], 4
      %s62 = int_to_ptr.vmem [resolvable:$true] %s61
      %67 = dma.hbm_to_vmem [thread:$0]  %s9, 1024, %s62, [#allocation5], 64, 64, 4
    $region41: #{model_2_forward.1} parent=1 // pred_fallthru
      _
    // Predicated region
    $region42: #{model_2_forward.1} parent=1 // pred_check
      _
    $region43: #{model_2_forward.1} parent=1 // pred_check_branch
      %69 = sbr.rel (0) target = $region45
    $region44: #{model_2_forward.1} parent=1 // pred_region
      _
    $region45: #{model_2_forward.1} parent=1 // pred_fallthru
      _
    // Predicated region
    $region46: #{model_2_forward.1} parent=1 // pred_check
      _
    $region47: #{model_2_forward.1} parent=1 // pred_check_branch
      %71 = sbr.rel (0) target = $region49
    $region48: #{model_2_forward.1} parent=1 // pred_region
      %72 = dma.done [#allocation3], 2048
    $region49: #{model_2_forward.1} parent=1 // pred_fallthru
      _
    // Predicated region
    $region50: #{model_2_forward.1} parent=1 // pred_check
      _
    $region51: #{model_2_forward.1} parent=1 // pred_check_branch
      %74 = sbr.rel (0) target = $region53
    $region52: #{model_2_forward.1} parent=1 // pred_region
      %75 = dma.done [#allocation5], 1024
    $region53: #{model_2_forward.1} parent=1 // pred_fallthru
      _
    // Predicated region
    $region54: #{model_2_forward.1} parent=1 // pred_check
      _
    $region55: #{model_2_forward.1} parent=1 // pred_check_branch
      %77 = sbr.rel (0) target = $region57
    $region56: #{model_2_forward.1} parent=1 // pred_region
      %78 = dma.done [#allocation5], 1024
    $region57: #{model_2_forward.1} parent=1 // pred_fallthru
      _
    %v80 = vld [vmem:[%s0] sm:$0xff]
    %v81 = vld [vmem:[%s0 + $0x8] sm:$0xff]
    %v82 = vld [vmem:[%s0 + $0x10] sm:$0xff]
    %v83 = vld [vmem:[%s0 + $0x18] sm:$0xff]
    %v84 = vld [vmem:[%s0 + $0x20] sm:$0xff]
    %v85 = vld [vmem:[%s0 + $0x28] sm:$0xff]
    %v86 = vld [vmem:[%s0 + $0x30] sm:$0xff]
    %v87 = vld [vmem:[%s0 + $0x38] sm:$0xff]
    %v88 = vld [vmem:[%s0 + $0x40] sm:$0xff]
    %v89 = vld [vmem:[%s0 + $0x48] sm:$0xff]
    %v90 = vld [vmem:[%s0 + $0x50] sm:$0xff]
    %v91 = vld [vmem:[%s0 + $0x58] sm:$0xff]
    %v92 = vld [vmem:[%s0 + $0x60] sm:$0xff]
    %v93 = vld [vmem:[%s0 + $0x68] sm:$0xff]
    %v94 = vld [vmem:[%s0 + $0x70] sm:$0xff]
    %v95 = vld [vmem:[%s0 + $0x78] sm:$0xff]
    %v96 = vld [vmem:[%s0 + $0x80] sm:$0xff]
    %v97 = vld [vmem:[%s0 + $0x88] sm:$0xff]
    %v98 = vld [vmem:[%s0 + $0x90] sm:$0xff]
    %v99 = vld [vmem:[%s0 + $0x98] sm:$0xff]
    %v100 = vld [vmem:[%s0 + $0xa0] sm:$0xff]
    %v101 = vld [vmem:[%s0 + $0xa8] sm:$0xff]
    %v102 = vld [vmem:[%s0 + $0xb0] sm:$0xff]
    %v103 = vld [vmem:[%s0 + $0xb8] sm:$0xff]
    %v104 = vld [vmem:[%s0 + $0xc0] sm:$0xff]
    %v105 = vld [vmem:[%s0 + $0xc8] sm:$0xff]
    %v106 = vld [vmem:[%s0 + $0xd0] sm:$0xff]
    %v107 = vld [vmem:[%s0 + $0xd8] sm:$0xff]
    %v108 = vld [vmem:[%s0 + $0xe0] sm:$0xff]
    %v109 = vld [vmem:[%s0 + $0xe8] sm:$0xff]
    %v110 = vld [vmem:[%s0 + $0xf0] sm:$0xff]
    %v111 = vld [vmem:[%s0 + $0xf8] sm:$0xff]
    %v112 = vld [vmem:[%s0 + $0x100] sm:$0xff]
    %v113 = vld [vmem:[%s0 + $0x108] sm:$0xff]
    %v114 = vld [vmem:[%s0 + $0x110] sm:$0xff]
    %v115 = vld [vmem:[%s0 + $0x118] sm:$0xff]
    %v116 = vld [vmem:[%s0 + $0x120] sm:$0xff]
    %v117 = vld [vmem:[%s0 + $0x128] sm:$0xff]
    %v118 = vld [vmem:[%s0 + $0x130] sm:$0xff]
    %v119 = vld [vmem:[%s0 + $0x138] sm:$0xff]
    %v120 = vld [vmem:[%s0 + $0x140] sm:$0xff]
    %v121 = vld [vmem:[%s0 + $0x148] sm:$0xff]
    %v122 = vld [vmem:[%s0 + $0x150] sm:$0xff]
    %v123 = vld [vmem:[%s0 + $0x158] sm:$0xff]
    %v124 = vld [vmem:[%s0 + $0x160] sm:$0xff]
    %v125 = vld [vmem:[%s0 + $0x168] sm:$0xff]
    %v126 = vld [vmem:[%s0 + $0x170] sm:$0xff]
    %v127 = vld [vmem:[%s0 + $0x178] sm:$0xff]
    %v128 = vld [vmem:[%s0 + $0x180] sm:$0xff]
    %v129 = vld [vmem:[%s0 + $0x188] sm:$0xff]
    %v130 = vld [vmem:[%s0 + $0x190] sm:$0xff]
    %v131 = vld [vmem:[%s0 + $0x198] sm:$0xff]
    %v132 = vld [vmem:[%s0 + $0x1a0] sm:$0xff]
    %v133 = vld [vmem:[%s0 + $0x1a8] sm:$0xff]
    %v134 = vld [vmem:[%s0 + $0x1b0] sm:$0xff]
    %v135 = vld [vmem:[%s0 + $0x1b8] sm:$0xff]
    %v136 = vld [vmem:[%s0 + $0x1c0] sm:$0xff]
    %v137 = vld [vmem:[%s0 + $0x1c8] sm:$0xff]
    %v138 = vld [vmem:[%s0 + $0x1d0] sm:$0xff]
    %v139 = vld [vmem:[%s0 + $0x1d8] sm:$0xff]
    %v140 = vld [vmem:[%s0 + $0x1e0] sm:$0xff]
    %v141 = vld [vmem:[%s0 + $0x1e8] sm:$0xff]
    %v142 = vld [vmem:[%s0 + $0x1f0] sm:$0xff]
    %v143 = vld [vmem:[%s0 + $0x1f8] sm:$0xff]
    %v144 = vpack.c.bf16 %v84, %v80
    %v145 = vpack.c.bf16 %v85, %v81
    %v146 = vpack.c.bf16 %v86, %v82
    %v147 = vpack.c.bf16 %v87, %v83
    %v148 = vpack.c.bf16 %v92, %v88
    %v149 = vpack.c.bf16 %v93, %v89
    %v150 = vpack.c.bf16 %v94, %v90
    %v151 = vpack.c.bf16 %v95, %v91
    %v152 = vpack.c.bf16 %v100, %v96
    %v153 = vpack.c.bf16 %v101, %v97
    %v154 = vpack.c.bf16 %v102, %v98
    %v155 = vpack.c.bf16 %v103, %v99
    %v156 = vpack.c.bf16 %v108, %v104
    %v157 = vpack.c.bf16 %v109, %v105
    %v158 = vpack.c.bf16 %v110, %v106
    %v159 = vpack.c.bf16 %v111, %v107
    %v160 = vpack.c.bf16 %v116, %v112
    %v161 = vpack.c.bf16 %v117, %v113
    %v162 = vpack.c.bf16 %v118, %v114
    %v163 = vpack.c.bf16 %v119, %v115
    %v164 = vpack.c.bf16 %v124, %v120
    %v165 = vpack.c.bf16 %v125, %v121
    %v166 = vpack.c.bf16 %v126, %v122
    %v167 = vpack.c.bf16 %v127, %v123
    %v168 = vpack.c.bf16 %v132, %v128
    %v169 = vpack.c.bf16 %v133, %v129
    %v170 = vpack.c.bf16 %v134, %v130
    %v171 = vpack.c.bf16 %v135, %v131
    %v172 = vpack.c.bf16 %v140, %v136
    %v173 = vpack.c.bf16 %v141, %v137
    %v174 = vpack.c.bf16 %v142, %v138
    %v175 = vpack.c.bf16 %v143, %v139
    %v176 = vld [vmem:[%s1] sm:$0xff]
    %v177 = vld [vmem:[%s1 + $0x8] sm:$0xff]
    %v178 = vld [vmem:[%s1 + $0x10] sm:$0xff]
    %v179 = vld [vmem:[%s1 + $0x18] sm:$0xff]
    %v180 = vld [vmem:[%s1 + $0x20] sm:$0xff]
    %v181 = vld [vmem:[%s1 + $0x28] sm:$0xff]
    %v182 = vld [vmem:[%s1 + $0x30] sm:$0xff]
    %v183 = vld [vmem:[%s1 + $0x38] sm:$0xff]
    %v184 = vld [vmem:[%s1 + $0x40] sm:$0xff]
    %v185 = vld [vmem:[%s1 + $0x48] sm:$0xff]
    %v186 = vld [vmem:[%s1 + $0x50] sm:$0xff]
    %v187 = vld [vmem:[%s1 + $0x58] sm:$0xff]
    %v188 = vld [vmem:[%s1 + $0x60] sm:$0xff]
    %v189 = vld [vmem:[%s1 + $0x68] sm:$0xff]
    %v190 = vld [vmem:[%s1 + $0x70] sm:$0xff]
    %v191 = vld [vmem:[%s1 + $0x78] sm:$0xff]
    %v192 = vld [vmem:[%s1 + $0x80] sm:$0xff]
    %v193 = vld [vmem:[%s1 + $0x88] sm:$0xff]
    %v194 = vld [vmem:[%s1 + $0x90] sm:$0xff]
    %v195 = vld [vmem:[%s1 + $0x98] sm:$0xff]
    %v196 = vld [vmem:[%s1 + $0xa0] sm:$0xff]
    %v197 = vld [vmem:[%s1 + $0xa8] sm:$0xff]
    %v198 = vld [vmem:[%s1 + $0xb0] sm:$0xff]
    %v199 = vld [vmem:[%s1 + $0xb8] sm:$0xff]
    %v200 = vld [vmem:[%s1 + $0xc0] sm:$0xff]
    %v201 = vld [vmem:[%s1 + $0xc8] sm:$0xff]
    %v202 = vld [vmem:[%s1 + $0xd0] sm:$0xff]
    %v203 = vld [vmem:[%s1 + $0xd8] sm:$0xff]
    %v204 = vld [vmem:[%s1 + $0xe0] sm:$0xff]
    %v205 = vld [vmem:[%s1 + $0xe8] sm:$0xff]
    %v206 = vld [vmem:[%s1 + $0xf0] sm:$0xff]
    %v207 = vld [vmem:[%s1 + $0xf8] sm:$0xff]
    %v208 = vld [vmem:[%s1 + $0x100] sm:$0xff]
    %v209 = vld [vmem:[%s1 + $0x108] sm:$0xff]
    %v210 = vld [vmem:[%s1 + $0x110] sm:$0xff]
    %v211 = vld [vmem:[%s1 + $0x118] sm:$0xff]
    %v212 = vld [vmem:[%s1 + $0x120] sm:$0xff]
    %v213 = vld [vmem:[%s1 + $0x128] sm:$0xff]
    %v214 = vld [vmem:[%s1 + $0x130] sm:$0xff]
    %v215 = vld [vmem:[%s1 + $0x138] sm:$0xff]
    %v216 = vld [vmem:[%s1 + $0x140] sm:$0xff]
    %v217 = vld [vmem:[%s1 + $0x148] sm:$0xff]
    %v218 = vld [vmem:[%s1 + $0x150] sm:$0xff]
    %v219 = vld [vmem:[%s1 + $0x158] sm:$0xff]
    %v220 = vld [vmem:[%s1 + $0x160] sm:$0xff]
    %v221 = vld [vmem:[%s1 + $0x168] sm:$0xff]
    %v222 = vld [vmem:[%s1 + $0x170] sm:$0xff]
    %v223 = vld [vmem:[%s1 + $0x178] sm:$0xff]
    %v224 = vld [vmem:[%s1 + $0x180] sm:$0xff]
    %v225 = vld [vmem:[%s1 + $0x188] sm:$0xff]
    %v226 = vld [vmem:[%s1 + $0x190] sm:$0xff]
    %v227 = vld [vmem:[%s1 + $0x198] sm:$0xff]
    %v228 = vld [vmem:[%s1 + $0x1a0] sm:$0xff]
    %v229 = vld [vmem:[%s1 + $0x1a8] sm:$0xff]
    %v230 = vld [vmem:[%s1 + $0x1b0] sm:$0xff]
    %v231 = vld [vmem:[%s1 + $0x1b8] sm:$0xff]
    %v232 = vld [vmem:[%s2] sm:$0x3]
    %v234 = vlaneseq
    %v235 = vshrl.u32 %v234, 7
    %v236 = vsub.s32 0, %v235
    %v237 = vrot.slane %v232, %v236
    %v238 = vlaneseq
    %v239 = vshrl.u32 %v238, 7
    %v240 = vsub.s32 1, %v239
    %v241 = vrot.slane %v232, %v240
    %v300 = vunpack.c.l.b16 %v176
    %v301 = vunpack.c.h.b16 %v176
    %v302 = vunpack.c.l.b16 %v177
    %v303 = vunpack.c.h.b16 %v177
    %v304 = vunpack.c.l.b16 %v178
    %v305 = vunpack.c.h.b16 %v178
    %v306 = vunpack.c.l.b16 %v179
    %v307 = vunpack.c.h.b16 %v179
    %v308 = vunpack.c.l.b16 %v180
    %v309 = vunpack.c.h.b16 %v180
    %v310 = vunpack.c.l.b16 %v181
    %v311 = vunpack.c.h.b16 %v181
    %v312 = vunpack.c.l.b16 %v182
    %v313 = vunpack.c.h.b16 %v182
    %v314 = vunpack.c.l.b16 %v183
    %v315 = vunpack.c.h.b16 %v183
    %v316 = vunpack.c.l.b16 %v184
    %v317 = vunpack.c.h.b16 %v184
    %v318 = vunpack.c.l.b16 %v185
    %v319 = vunpack.c.h.b16 %v185
    %v320 = vunpack.c.l.b16 %v186
    %v321 = vunpack.c.h.b16 %v186
    %v322 = vunpack.c.l.b16 %v187
    %v323 = vunpack.c.h.b16 %v187
    %v324 = vunpack.c.l.b16 %v188
    %v325 = vunpack.c.h.b16 %v188
    %v326 = vunpack.c.l.b16 %v189
    %v327 = vunpack.c.h.b16 %v189
    %v328 = vunpack.c.l.b16 %v190
    %v329 = vunpack.c.h.b16 %v190
    %v330 = vunpack.c.l.b16 %v191
    %v331 = vunpack.c.h.b16 %v191
    %v332 = vunpack.c.l.b16 %v192
    %v333 = vunpack.c.h.b16 %v192
    %v334 = vunpack.c.l.b16 %v193
    %v335 = vunpack.c.h.b16 %v193
    %v336 = vunpack.c.l.b16 %v194
    %v337 = vunpack.c.h.b16 %v194
    %v338 = vunpack.c.l.b16 %v195
    %v339 = vunpack.c.h.b16 %v195
    %v340 = vunpack.c.l.b16 %v196
    %v341 = vunpack.c.h.b16 %v196
    %v342 = vunpack.c.l.b16 %v197
    %v343 = vunpack.c.h.b16 %v197
    %v344 = vunpack.c.l.b16 %v198
    %v345 = vunpack.c.h.b16 %v198
    %v346 = vunpack.c.l.b16 %v199
    %v347 = vunpack.c.h.b16 %v199
    %v348 = vunpack.c.l.b16 %v200
    %v349 = vunpack.c.h.b16 %v200
    %v350 = vunpack.c.l.b16 %v201
    %v351 = vunpack.c.h.b16 %v201
    %v352 = vunpack.c.l.b16 %v202
    %v353 = vunpack.c.h.b16 %v202
    %v354 = vunpack.c.l.b16 %v203
    %v355 = vunpack.c.h.b16 %v203
    %v356 = vunpack.c.l.b16 %v204
    %v357 = vunpack.c.h.b16 %v204
    %v358 = vunpack.c.l.b16 %v205
    %v359 = vunpack.c.h.b16 %v205
    %v360 = vunpack.c.l.b16 %v206
    %v361 = vunpack.c.h.b16 %v206
    %v362 = vunpack.c.l.b16 %v207
    %v363 = vunpack.c.h.b16 %v207
    %v364 = vunpack.c.l.b16 %v208
    %v365 = vunpack.c.h.b16 %v208
    %v366 = vunpack.c.l.b16 %v209
    %v367 = vunpack.c.h.b16 %v209
    %v368 = vunpack.c.l.b16 %v210
    %v369 = vunpack.c.h.b16 %v210
    %v370 = vunpack.c.l.b16 %v211
    %v371 = vunpack.c.h.b16 %v211
    %v372 = vunpack.c.l.b16 %v212
    %v373 = vunpack.c.h.b16 %v212
    %v374 = vunpack.c.l.b16 %v213
    %v375 = vunpack.c.h.b16 %v213
    %v376 = vunpack.c.l.b16 %v214
    %v377 = vunpack.c.h.b16 %v214
    %v378 = vunpack.c.l.b16 %v215
    %v379 = vunpack.c.h.b16 %v215
    %v380 = vunpack.c.l.b16 %v216
    %v381 = vunpack.c.h.b16 %v216
    %v382 = vunpack.c.l.b16 %v217
    %v383 = vunpack.c.h.b16 %v217
    %v384 = vunpack.c.l.b16 %v218
    %v385 = vunpack.c.h.b16 %v218
    %v386 = vunpack.c.l.b16 %v219
    %v387 = vunpack.c.h.b16 %v219
    %v388 = vunpack.c.l.b16 %v220
    %v389 = vunpack.c.h.b16 %v220
    %v390 = vunpack.c.l.b16 %v221
    %v391 = vunpack.c.h.b16 %v221
    %v392 = vunpack.c.l.b16 %v222
    %v393 = vunpack.c.h.b16 %v222
    %v394 = vunpack.c.l.b16 %v223
    %v395 = vunpack.c.h.b16 %v223
    %v396 = vunpack.c.l.b16 %v224
    %v397 = vunpack.c.h.b16 %v224
    %v398 = vunpack.c.l.b16 %v225
    %v399 = vunpack.c.h.b16 %v225
    %v400 = vunpack.c.l.b16 %v226
    %v401 = vunpack.c.h.b16 %v226
    %v402 = vunpack.c.l.b16 %v227
    %v403 = vunpack.c.h.b16 %v227
    %v404 = vunpack.c.l.b16 %v228
    %v405 = vunpack.c.h.b16 %v228
    %v406 = vunpack.c.l.b16 %v229
    %v407 = vunpack.c.h.b16 %v229
    %v408 = vunpack.c.l.b16 %v230
    %v409 = vunpack.c.h.b16 %v230
    %v410 = vunpack.c.l.b16 %v231
    %v411 = vunpack.c.h.b16 %v231
    %v412 = vpack.c.b16 %v302, %v300
    %v413 = vpack.c.b16 %v303, %v301
    %v414 = vpack.c.b16 %v306, %v304
    %v415 = vpack.c.b16 %v307, %v305
    %v416 = vpack.c.b16 %v310, %v308
    %v417 = vpack.c.b16 %v311, %v309
    %v418 = vpack.c.b16 %v314, %v312
    %v419 = vpack.c.b16 %v315, %v313
    %v420 = vpack.c.b16 %v318, %v316
    %v421 = vpack.c.b16 %v319, %v317
    %v422 = vpack.c.b16 %v322, %v320
    %v423 = vpack.c.b16 %v323, %v321
    %v424 = vpack.c.b16 %v326, %v324
    %v425 = vpack.c.b16 %v327, %v325
    %v426 = vpack.c.b16 %v330, %v328
    %v427 = vpack.c.b16 %v331, %v329
    %v428 = vpack.c.b16 %v334, %v332
    %v429 = vpack.c.b16 %v335, %v333
    %v430 = vpack.c.b16 %v338, %v336
    %v431 = vpack.c.b16 %v339, %v337
    %v432 = vpack.c.b16 %v342, %v340
    %v433 = vpack.c.b16 %v343, %v341
    %v434 = vpack.c.b16 %v346, %v344
    %v435 = vpack.c.b16 %v347, %v345
    %v436 = vpack.c.b16 %v350, %v348
    %v437 = vpack.c.b16 %v351, %v349
    %v438 = vpack.c.b16 %v354, %v352
    %v439 = vpack.c.b16 %v355, %v353
    %v440 = vpack.c.b16 %v358, %v356
    %v441 = vpack.c.b16 %v359, %v357
    %v442 = vpack.c.b16 %v362, %v360
    %v443 = vpack.c.b16 %v363, %v361
    %v444 = vpack.c.b16 %v366, %v364
    %v445 = vpack.c.b16 %v367, %v365
    %v446 = vpack.c.b16 %v370, %v368
    %v447 = vpack.c.b16 %v371, %v369
    %v448 = vpack.c.b16 %v374, %v372
    %v449 = vpack.c.b16 %v375, %v373
    %v450 = vpack.c.b16 %v378, %v376
    %v451 = vpack.c.b16 %v379, %v377
    %v452 = vpack.c.b16 %v382, %v380
    %v453 = vpack.c.b16 %v383, %v381
    %v454 = vpack.c.b16 %v386, %v384
    %v455 = vpack.c.b16 %v387, %v385
    %v456 = vpack.c.b16 %v390, %v388
    %v457 = vpack.c.b16 %v391, %v389
    %v458 = vpack.c.b16 %v394, %v392
    %v459 = vpack.c.b16 %v395, %v393
    %v460 = vpack.c.b16 %v398, %v396
    %v461 = vpack.c.b16 %v399, %v397
    %v462 = vpack.c.b16 %v402, %v400
    %v463 = vpack.c.b16 %v403, %v401
    %v464 = vpack.c.b16 %v406, %v404
    %v465 = vpack.c.b16 %v407, %v405
    %v466 = vpack.c.b16 %v410, %v408
    %v467 = vpack.c.b16 %v411, %v409
    %vm524 = vcmask 523264
    %v526 = vsel %vm524, %v147, 0
    %v529 = vsel %vm524, %v151, 0
    %v532 = vsel %vm524, %v155, 0
    %v535 = vsel %vm524, %v159, 0
    %v538 = vsel %vm524, %v163, 0
    %v541 = vsel %vm524, %v167, 0
    %v544 = vsel %vm524, %v171, 0
    %v547 = vsel %vm524, %v175, 0
    %549 = vmatprep.subr.bf16.mxu0 %v413
    %550 = vmatpush1.bf16.msra.mxu0 %v412
    %551 = vmatprep.subr.bf16.mxu0 %v415
    %552 = vmatpush1.bf16.msra.mxu0 %v414
    %553 = vmatprep.subr.bf16.mxu0 %v417
    %554 = vmatpush1.bf16.msra.mxu0 %v416
    %555 = vmatprep.subr.bf16.mxu0 %v419
    %556 = vmatpush1.bf16.msra.mxu0 %v418
    %557 = vmatprep.subr.bf16.mxu0 %v421
    %558 = vmatpush1.bf16.msra.mxu0 %v420
    %559 = vmatprep.subr.bf16.mxu0 %v423
    %560 = vmatpush1.bf16.msra.mxu0 %v422
    %561 = vmatprep.subr.bf16.mxu0 %v425
    %562 = vmatpush1.bf16.msra.mxu0 %v424
    %563 = vmatprep.subr.bf16.mxu0 %v427
    %564 = vmatpush1.bf16.msra.mxu0 %v426
    %565 = vmatprep.subr.bf16.mxu0 %v429
    %566 = vmatpush1.bf16.msra.mxu0 %v428
    %567 = vmatprep.subr.bf16.mxu0 %v431
    %568 = vmatpush1.bf16.msra.mxu0 %v430
    %569 = vmatprep.subr.bf16.mxu0 %v433
    %570 = vmatpush1.bf16.msra.mxu0 %v432
    %571 = vmatprep.subr.bf16.mxu0 %v435
    %572 = vmatpush1.bf16.msra.mxu0 %v434
    %573 = vmatprep.subr.bf16.mxu0 %v437
    %574 = vmatpush1.bf16.msra.mxu0 %v436
    %575 = vmatprep.subr.bf16.mxu0 %v439
    %576 = vmatpush1.bf16.msra.mxu0 %v438
    %577 = vmatprep.subr.bf16.mxu0 %v441
    %578 = vmatpush1.bf16.msra.mxu0 %v440
    %579 = vmatprep.subr.bf16.mxu0 %v443
    %580 = vmatpush1.bf16.msra.mxu0 %v442
    %581 = vmatprep.mubr.bf16.mxu0 %v145
    %582 = vmatmul.mubr.bf16.gmra.mrb[0].mxu0 %v144
    %v583 = vpop.f32.mrb[0].mxu0
    %v584 = vadd.f32 %v237, %v583
    %v585 = vpop.f32.mrb[0].mxu0
    %v586 = vadd.f32 %v241, %v585
    %v587 = vpop.f32.mrb[0].mxu0
    %v588 = vadd.f32 %v237, %v587
    %v589 = vpop.f32.mrb[0].mxu0
    %v590 = vadd.f32 %v241, %v589
    %591 = vmatprep.mubr.bf16.mxu0 %v149
    %592 = vmatmul.mubr.bf16.gmra.mrb[0].mxu0 %v148
    %v593 = vpop.f32.mrb[0].mxu0
    %v594 = vadd.f32 %v237, %v593
    %v595 = vpop.f32.mrb[0].mxu0
    %v596 = vadd.f32 %v241, %v595
    %v597 = vpop.f32.mrb[0].mxu0
    %v598 = vadd.f32 %v237, %v597
    %v599 = vpop.f32.mrb[0].mxu0
    %v600 = vadd.f32 %v241, %v599
    %601 = vmatprep.mubr.bf16.mxu0 %v153
    %602 = vmatmul.mubr.bf16.gmra.mrb[0].mxu0 %v152
    %v603 = vpop.f32.mrb[0].mxu0
    %v604 = vadd.f32 %v237, %v603
    %v605 = vpop.f32.mrb[0].mxu0
    %v606 = vadd.f32 %v241, %v605
    %v607 = vpop.f32.mrb[0].mxu0
    %v608 = vadd.f32 %v237, %v607
    %v609 = vpop.f32.mrb[0].mxu0
    %v610 = vadd.f32 %v241, %v609
    %611 = vmatprep.mubr.bf16.mxu0 %v157
    %612 = vmatmul.mubr.bf16.gmra.mrb[0].mxu0 %v156
    %v613 = vpop.f32.mrb[0].mxu0
    %v614 = vadd.f32 %v237, %v613
    %v615 = vpop.f32.mrb[0].mxu0
    %v616 = vadd.f32 %v241, %v615
    %v617 = vpop.f32.mrb[0].mxu0
    %v618 = vadd.f32 %v237, %v617
    %v619 = vpop.f32.mrb[0].mxu0
    %v620 = vadd.f32 %v241, %v619
    %621 = vmatprep.mubr.bf16.mxu0 %v161
    %622 = vmatmul.mubr.bf16.gmra.mrb[0].mxu0 %v160
    %v623 = vpop.f32.mrb[0].mxu0
    %v624 = vadd.f32 %v237, %v623
    %v625 = vpop.f32.mrb[0].mxu0
    %v626 = vadd.f32 %v241, %v625
    %v627 = vpop.f32.mrb[0].mxu0
    %v628 = vadd.f32 %v237, %v627
    %v629 = vpop.f32.mrb[0].mxu0
    %v630 = vadd.f32 %v241, %v629
    %631 = vmatprep.mubr.bf16.mxu0 %v165
    %632 = vmatmul.mubr.bf16.gmra.mrb[0].mxu0 %v164
    %v633 = vpop.f32.mrb[0].mxu0
    %v634 = vadd.f32 %v237, %v633
    %v635 = vpop.f32.mrb[0].mxu0
    %v636 = vadd.f32 %v241, %v635
    %v637 = vpop.f32.mrb[0].mxu0
    %v638 = vadd.f32 %v237, %v637
    %v639 = vpop.f32.mrb[0].mxu0
    %v640 = vadd.f32 %v241, %v639
    %641 = vmatprep.mubr.bf16.mxu0 %v169
    %642 = vmatmul.mubr.bf16.gmra.mrb[0].mxu0 %v168
    %v643 = vpop.f32.mrb[0].mxu0
    %v644 = vadd.f32 %v237, %v643
    %v645 = vpop.f32.mrb[0].mxu0
    %v646 = vadd.f32 %v241, %v645
    %v647 = vpop.f32.mrb[0].mxu0
    %v648 = vadd.f32 %v237, %v647
    %v649 = vpop.f32.mrb[0].mxu0
    %v650 = vadd.f32 %v241, %v649
    %651 = vmatprep.mubr.bf16.mxu0 %v173
    %652 = vmatmul.mubr.bf16.gmra.mrb[0].mxu0 %v172
    %v653 = vpop.f32.mrb[0].mxu0
    %v654 = vadd.f32 %v237, %v653
    %v655 = vpop.f32.mrb[0].mxu0
    %v656 = vadd.f32 %v241, %v655
    %v657 = vpop.f32.mrb[0].mxu0
    %v658 = vadd.f32 %v237, %v657
    %v659 = vpop.f32.mrb[0].mxu0
    %v660 = vadd.f32 %v241, %v659
    %661 = vdwg.mxu0
    %662 = vmatprep.subr.bf16.mxu0 %v445
    %663 = vmatpush1.bf16.msra.mxu0 %v444
    %664 = vmatprep.subr.bf16.mxu0 %v447
    %665 = vmatpush1.bf16.msra.mxu0 %v446
    %666 = vmatprep.subr.bf16.mxu0 %v449
    %667 = vmatpush1.bf16.msra.mxu0 %v448
    %668 = vmatprep.subr.bf16.mxu0 %v451
    %669 = vmatpush1.bf16.msra.mxu0 %v450
    %670 = vmatprep.subr.bf16.mxu0 %v453
    %671 = vmatpush1.bf16.msra.mxu0 %v452
    %672 = vmatprep.subr.bf16.mxu0 %v455
    %673 = vmatpush1.bf16.msra.mxu0 %v454
    %674 = vmatprep.subr.bf16.mxu0 %v457
    %675 = vmatpush1.bf16.msra.mxu0 %v456
    %676 = vmatprep.subr.bf16.mxu0 %v459
    %677 = vmatpush1.bf16.msra.mxu0 %v458
    %678 = vmatprep.subr.bf16.mxu0 %v461
    %679 = vmatpush1.bf16.msra.mxu0 %v460
    %680 = vmatprep.subr.bf16.mxu0 %v463
    %681 = vmatpush1.bf16.msra.mxu0 %v462
    %682 = vmatprep.subr.bf16.mxu0 %v465
    %683 = vmatpush1.bf16.msra.mxu0 %v464
    %684 = vmatprep.subr.bf16.mxu0 %v467
    %685 = vmatpush1.bf16.msra.mxu0 %v466
    %686 = vmatprep.subr.bf16.mxu0 0
    %687 = vmatpush1.bf16.msra.mxu0 0
    %688 = vmatprep.subr.bf16.mxu0 0
    %689 = vmatpush1.bf16.msra.mxu0 0
    %690 = vmatprep.subr.bf16.mxu0 0
    %691 = vmatpush1.bf16.msra.mxu0 0
    %692 = vmatprep.subr.bf16.mxu0 0
    %693 = vmatpush1.bf16.msra.mxu0 0
    %694 = vmatprep.mubr.bf16.mxu0 %v526
    %695 = vmatmul.mubr.bf16.gmra.mrb[0].mxu0 %v146
    %v696 = vpop.f32.mrb[0].mxu0
    %v697 = vadd.f32 %v584, %v696
    %v698 = vpop.f32.mrb[0].mxu0
    %v699 = vadd.f32 %v586, %v698
    %v700 = vpop.f32.mrb[0].mxu0
    %v701 = vadd.f32 %v588, %v700
    %v702 = vpop.f32.mrb[0].mxu0
    %v703 = vadd.f32 %v590, %v702
    %704 = vmatprep.mubr.bf16.mxu0 %v529
    %705 = vmatmul.mubr.bf16.gmra.mrb[0].mxu0 %v150
    %v706 = vpop.f32.mrb[0].mxu0
    %v707 = vadd.f32 %v594, %v706
    %v708 = vpop.f32.mrb[0].mxu0
    %v709 = vadd.f32 %v596, %v708
    %v710 = vpop.f32.mrb[0].mxu0
    %v711 = vadd.f32 %v598, %v710
    %v712 = vpop.f32.mrb[0].mxu0
    %v713 = vadd.f32 %v600, %v712
    %714 = vmatprep.mubr.bf16.mxu0 %v532
    %715 = vmatmul.mubr.bf16.gmra.mrb[0].mxu0 %v154
    %v716 = vpop.f32.mrb[0].mxu0
    %v717 = vadd.f32 %v604, %v716
    %v718 = vpop.f32.mrb[0].mxu0
    %v719 = vadd.f32 %v606, %v718
    %v720 = vpop.f32.mrb[0].mxu0
    %v721 = vadd.f32 %v608, %v720
    %v722 = vpop.f32.mrb[0].mxu0
    %v723 = vadd.f32 %v610, %v722
    %724 = vmatprep.mubr.bf16.mxu0 %v535
    %725 = vmatmul.mubr.bf16.gmra.mrb[0].mxu0 %v158
    %v726 = vpop.f32.mrb[0].mxu0
    %v727 = vadd.f32 %v614, %v726
    %v728 = vpop.f32.mrb[0].mxu0
    %v729 = vadd.f32 %v616, %v728
    %v730 = vpop.f32.mrb[0].mxu0
    %v731 = vadd.f32 %v618, %v730
    %v732 = vpop.f32.mrb[0].mxu0
    %v733 = vadd.f32 %v620, %v732
    %734 = vmatprep.mubr.bf16.mxu0 %v538
    %735 = vmatmul.mubr.bf16.gmra.mrb[0].mxu0 %v162
    %v736 = vpop.f32.mrb[0].mxu0
    %v737 = vadd.f32 %v624, %v736
    %v738 = vpop.f32.mrb[0].mxu0
    %v739 = vadd.f32 %v626, %v738
    %v740 = vpop.f32.mrb[0].mxu0
    %v741 = vadd.f32 %v628, %v740
    %v742 = vpop.f32.mrb[0].mxu0
    %v743 = vadd.f32 %v630, %v742
    %744 = vmatprep.mubr.bf16.mxu0 %v541
    %745 = vmatmul.mubr.bf16.gmra.mrb[0].mxu0 %v166
    %v746 = vpop.f32.mrb[0].mxu0
    %v747 = vadd.f32 %v634, %v746
    %v748 = vpop.f32.mrb[0].mxu0
    %v749 = vadd.f32 %v636, %v748
    %v750 = vpop.f32.mrb[0].mxu0
    %v751 = vadd.f32 %v638, %v750
    %v752 = vpop.f32.mrb[0].mxu0
    %v753 = vadd.f32 %v640, %v752
    %754 = vmatprep.mubr.bf16.mxu0 %v544
    %755 = vmatmul.mubr.bf16.gmra.mrb[0].mxu0 %v170
    %v756 = vpop.f32.mrb[0].mxu0
    %v757 = vadd.f32 %v644, %v756
    %v758 = vpop.f32.mrb[0].mxu0
    %v759 = vadd.f32 %v646, %v758
    %v760 = vpop.f32.mrb[0].mxu0
    %v761 = vadd.f32 %v648, %v760
    %v762 = vpop.f32.mrb[0].mxu0
    %v763 = vadd.f32 %v650, %v762
    %764 = vmatprep.mubr.bf16.mxu0 %v547
    %765 = vmatmul.mubr.bf16.gmra.mrb[0].mxu0 %v174
    %v766 = vpop.f32.mrb[0].mxu0
    %v767 = vadd.f32 %v654, %v766
    %v768 = vpop.f32.mrb[0].mxu0
    %v769 = vadd.f32 %v656, %v768
    %v770 = vpop.f32.mrb[0].mxu0
    %v771 = vadd.f32 %v658, %v770
    %v772 = vpop.f32.mrb[0].mxu0
    %v773 = vadd.f32 %v660, %v772
    %774 = vdwg.mxu0
    %v775 = vmax.f32 %v697, 0.0
    %v776 = vmax.f32 %v699, 0.0
    %v777 = vmax.f32 %v701, 0.0
    %v778 = vmax.f32 %v703, 0.0
    %v779 = vmax.f32 %v707, 0.0
    %v780 = vmax.f32 %v709, 0.0
    %v781 = vmax.f32 %v711, 0.0
    %v782 = vmax.f32 %v713, 0.0
    %v783 = vmax.f32 %v717, 0.0
    %v784 = vmax.f32 %v719, 0.0
    %v785 = vmax.f32 %v721, 0.0
    %v786 = vmax.f32 %v723, 0.0
    %v787 = vmax.f32 %v727, 0.0
    %v788 = vmax.f32 %v729, 0.0
    %v789 = vmax.f32 %v731, 0.0
    %v790 = vmax.f32 %v733, 0.0
    %v791 = vmax.f32 %v737, 0.0
    %v792 = vmax.f32 %v739, 0.0
    %v793 = vmax.f32 %v741, 0.0
    %v794 = vmax.f32 %v743, 0.0
    %v795 = vmax.f32 %v747, 0.0
    %v796 = vmax.f32 %v749, 0.0
    %v797 = vmax.f32 %v751, 0.0
    %v798 = vmax.f32 %v753, 0.0
    %v799 = vmax.f32 %v757, 0.0
    %v800 = vmax.f32 %v759, 0.0
    %v801 = vmax.f32 %v761, 0.0
    %v802 = vmax.f32 %v763, 0.0
    %v803 = vmax.f32 %v767, 0.0
    %v804 = vmax.f32 %v769, 0.0
    %v805 = vmax.f32 %v771, 0.0
    %v806 = vmax.f32 %v773, 0.0
    %v807 = vpack.c.bf16 %v777, %v775
    %v808 = vpack.c.bf16 %v778, %v776
    %v809 = vpack.c.bf16 %v781, %v779
    %v810 = vpack.c.bf16 %v782, %v780
    %v811 = vpack.c.bf16 %v785, %v783
    %v812 = vpack.c.bf16 %v786, %v784
    %v813 = vpack.c.bf16 %v789, %v787
    %v814 = vpack.c.bf16 %v790, %v788
    %v815 = vpack.c.bf16 %v793, %v791
    %v816 = vpack.c.bf16 %v794, %v792
    %v817 = vpack.c.bf16 %v797, %v795
    %v818 = vpack.c.bf16 %v798, %v796
    %v819 = vpack.c.bf16 %v801, %v799
    %v820 = vpack.c.bf16 %v802, %v800
    %v821 = vpack.c.bf16 %v805, %v803
    %v822 = vpack.c.bf16 %v806, %v804
    %v823 = vld [vmem:[#allocation2] sm:$0xf]
    %v824 = vld [vmem:[#allocation2 + $0x4] sm:$0xf]
    %v825 = vld [vmem:[#allocation2 + $0x8] sm:$0xf]
    %v826 = vld [vmem:[#allocation2 + $0xc] sm:$0xf]
    %v827 = vld [vmem:[#allocation2 + $0x10] sm:$0xf]
    %v828 = vld [vmem:[#allocation2 + $0x14] sm:$0xf]
    %v829 = vld [vmem:[#allocation2 + $0x18] sm:$0xf]
    %v830 = vld [vmem:[#allocation2 + $0x1c] sm:$0xf]
    %v831 = vld [vmem:[#allocation2 + $0x20] sm:$0xf]
    %v832 = vld [vmem:[#allocation2 + $0x24] sm:$0xf]
    %v833 = vld [vmem:[#allocation2 + $0x28] sm:$0xf]
    %v834 = vld [vmem:[#allocation2 + $0x2c] sm:$0xf]
    %v835 = vld [vmem:[#allocation2 + $0x30] sm:$0xf]
    %v836 = vld [vmem:[#allocation2 + $0x34] sm:$0xf]
    %v837 = vld [vmem:[#allocation2 + $0x38] sm:$0xf]
    %v838 = vld [vmem:[#allocation2 + $0x3c] sm:$0xf]
    %v839 = vld [vmem:[#allocation2 + $0x40] sm:$0xf]
    %v840 = vld [vmem:[#allocation2 + $0x44] sm:$0xf]
    %v841 = vld [vmem:[#allocation2 + $0x48] sm:$0xf]
    %v842 = vld [vmem:[#allocation2 + $0x4c] sm:$0xf]
    %v843 = vld [vmem:[#allocation2 + $0x50] sm:$0xf]
    %v844 = vld [vmem:[#allocation2 + $0x54] sm:$0xf]
    %v845 = vld [vmem:[#allocation2 + $0x58] sm:$0xf]
    %v846 = vld [vmem:[#allocation2 + $0x5c] sm:$0xf]
    %v847 = vld [vmem:[#allocation2 + $0x60] sm:$0xf]
    %v848 = vld [vmem:[#allocation2 + $0x64] sm:$0xf]
    %v849 = vld [vmem:[#allocation2 + $0x68] sm:$0xf]
    %v850 = vld [vmem:[#allocation2 + $0x6c] sm:$0xf]
    %v851 = vld [vmem:[#allocation2 + $0x70] sm:$0xf]
    %v852 = vld [vmem:[#allocation2 + $0x74] sm:$0xf]
    %v853 = vld [vmem:[#allocation2 + $0x78] sm:$0xf]
    %v854 = vld [vmem:[#allocation2 + $0x7c] sm:$0xf]
    %v855 = vld [vmem:[%s4] sm:$0x1]
    %v857 = vlaneseq
    %v858 = vshrl.u32 %v857, 7
    %v859 = vsub.s32 0, %v858
    %v860 = vrot.slane %v855, %v859
    %v894 = vunpack.c.l.b16 %v823
    %v895 = vunpack.c.l.b16 %v824
    %v896 = vunpack.c.l.b16 %v825
    %v897 = vunpack.c.l.b16 %v826
    %v898 = vunpack.c.l.b16 %v827
    %v899 = vunpack.c.l.b16 %v828
    %v900 = vunpack.c.l.b16 %v829
    %v901 = vunpack.c.l.b16 %v830
    %v902 = vunpack.c.l.b16 %v831
    %v903 = vunpack.c.l.b16 %v832
    %v904 = vunpack.c.l.b16 %v833
    %v905 = vunpack.c.l.b16 %v834
    %v906 = vunpack.c.l.b16 %v835
    %v907 = vunpack.c.l.b16 %v836
    %v908 = vunpack.c.l.b16 %v837
    %v909 = vunpack.c.l.b16 %v838
    %v910 = vunpack.c.l.b16 %v839
    %v911 = vunpack.c.l.b16 %v840
    %v912 = vunpack.c.l.b16 %v841
    %v913 = vunpack.c.l.b16 %v842
    %v914 = vunpack.c.l.b16 %v843
    %v915 = vunpack.c.l.b16 %v844
    %v916 = vunpack.c.l.b16 %v845
    %v917 = vunpack.c.l.b16 %v846
    %v918 = vunpack.c.l.b16 %v847
    %v919 = vunpack.c.l.b16 %v848
    %v920 = vunpack.c.l.b16 %v849
    %v921 = vunpack.c.l.b16 %v850
    %v922 = vunpack.c.l.b16 %v851
    %v923 = vunpack.c.l.b16 %v852
    %v924 = vunpack.c.l.b16 %v853
    %v925 = vunpack.c.l.b16 %v854
    %v926 = vpack.c.b16 %v895, %v894
    %v927 = vpack.c.b16 %v897, %v896
    %v928 = vpack.c.b16 %v899, %v898
    %v929 = vpack.c.b16 %v901, %v900
    %v930 = vpack.c.b16 %v903, %v902
    %v931 = vpack.c.b16 %v905, %v904
    %v932 = vpack.c.b16 %v907, %v906
    %v933 = vpack.c.b16 %v909, %v908
    %v934 = vpack.c.b16 %v911, %v910
    %v935 = vpack.c.b16 %v913, %v912
    %v936 = vpack.c.b16 %v915, %v914
    %v937 = vpack.c.b16 %v917, %v916
    %v938 = vpack.c.b16 %v919, %v918
    %v939 = vpack.c.b16 %v921, %v920
    %v940 = vpack.c.b16 %v923, %v922
    %v941 = vpack.c.b16 %v925, %v924
    %958 = vmatprep.subr.bf16.mxu0 0
    %959 = vmatpush1.bf16.msra.mxu0 %v926
    %960 = vmatprep.subr.bf16.mxu0 0
    %961 = vmatpush1.bf16.msra.mxu0 %v927
    %962 = vmatprep.subr.bf16.mxu0 0
    %963 = vmatpush1.bf16.msra.mxu0 %v928
    %964 = vmatprep.subr.bf16.mxu0 0
    %965 = vmatpush1.bf16.msra.mxu0 %v929
    %966 = vmatprep.subr.bf16.mxu0 0
    %967 = vmatpush1.bf16.msra.mxu0 %v930
    %968 = vmatprep.subr.bf16.mxu0 0
    %969 = vmatpush1.bf16.msra.mxu0 %v931
    %970 = vmatprep.subr.bf16.mxu0 0
    %971 = vmatpush1.bf16.msra.mxu0 %v932
    %972 = vmatprep.subr.bf16.mxu0 0
    %973 = vmatpush1.bf16.msra.mxu0 %v933
    %974 = vmatprep.subr.bf16.mxu0 0
    %975 = vmatpush1.bf16.msra.mxu0 %v934
    %976 = vmatprep.subr.bf16.mxu0 0
    %977 = vmatpush1.bf16.msra.mxu0 %v935
    %978 = vmatprep.subr.bf16.mxu0 0
    %979 = vmatpush1.bf16.msra.mxu0 %v936
    %980 = vmatprep.subr.bf16.mxu0 0
    %981 = vmatpush1.bf16.msra.mxu0 %v937
    %982 = vmatprep.subr.bf16.mxu0 0
    %983 = vmatpush1.bf16.msra.mxu0 %v938
    %984 = vmatprep.subr.bf16.mxu0 0
    %985 = vmatpush1.bf16.msra.mxu0 %v939
    %986 = vmatprep.subr.bf16.mxu0 0
    %987 = vmatpush1.bf16.msra.mxu0 %v940
    %988 = vmatprep.subr.bf16.mxu0 0
    %989 = vmatpush1.bf16.msra.mxu0 %v941
    %990 = vmatprep.mubr.bf16.mxu0 %v808
    %991 = vmatmul.mubr.bf16.gmra.mrb[0].mxu0 %v807
    %v992 = vpop.f32.mrb[0].mxu0
    %v993 = vadd.f32 %v860, %v992
    %v994 = vpop.f32.mrb[0].mxu0
    %v995 = vpop.f32.mrb[0].mxu0
    %v996 = vadd.f32 %v860, %v995
    %v997 = vpop.f32.mrb[0].mxu0
    %998 = vmatprep.mubr.bf16.mxu0 %v810
    %999 = vmatmul.mubr.bf16.gmra.mrb[0].mxu0 %v809
    %v1000 = vpop.f32.mrb[0].mxu0
    %v1001 = vadd.f32 %v860, %v1000
    %v1002 = vpop.f32.mrb[0].mxu0
    %v1003 = vpop.f32.mrb[0].mxu0
    %v1004 = vadd.f32 %v860, %v1003
    %v1005 = vpop.f32.mrb[0].mxu0
    %1006 = vmatprep.mubr.bf16.mxu0 %v812
    %1007 = vmatmul.mubr.bf16.gmra.mrb[0].mxu0 %v811
    %v1008 = vpop.f32.mrb[0].mxu0
    %v1009 = vadd.f32 %v860, %v1008
    %v1010 = vpop.f32.mrb[0].mxu0
    %v1011 = vpop.f32.mrb[0].mxu0
    %v1012 = vadd.f32 %v860, %v1011
    %v1013 = vpop.f32.mrb[0].mxu0
    %1014 = vmatprep.mubr.bf16.mxu0 %v814
    %1015 = vmatmul.mubr.bf16.gmra.mrb[0].mxu0 %v813
    %v1016 = vpop.f32.mrb[0].mxu0
    %v1017 = vadd.f32 %v860, %v1016
    %v1018 = vpop.f32.mrb[0].mxu0
    %v1019 = vpop.f32.mrb[0].mxu0
    %v1020 = vadd.f32 %v860, %v1019
    %v1021 = vpop.f32.mrb[0].mxu0
    %1022 = vmatprep.mubr.bf16.mxu0 %v816
    %1023 = vmatmul.mubr.bf16.gmra.mrb[0].mxu0 %v815
    %v1024 = vpop.f32.mrb[0].mxu0
    %v1025 = vadd.f32 %v860, %v1024
    %v1026 = vpop.f32.mrb[0].mxu0
    %v1027 = vpop.f32.mrb[0].mxu0
    %v1028 = vadd.f32 %v860, %v1027
    %v1029 = vpop.f32.mrb[0].mxu0
    %1030 = vmatprep.mubr.bf16.mxu0 %v818
    %1031 = vmatmul.mubr.bf16.gmra.mrb[0].mxu0 %v817
    %v1032 = vpop.f32.mrb[0].mxu0
    %v1033 = vadd.f32 %v860, %v1032
    %v1034 = vpop.f32.mrb[0].mxu0
    %v1035 = vpop.f32.mrb[0].mxu0
    %v1036 = vadd.f32 %v860, %v1035
    %v1037 = vpop.f32.mrb[0].mxu0
    %1038 = vmatprep.mubr.bf16.mxu0 %v820
    %1039 = vmatmul.mubr.bf16.gmra.mrb[0].mxu0 %v819
    %v1040 = vpop.f32.mrb[0].mxu0
    %v1041 = vadd.f32 %v860, %v1040
    %v1042 = vpop.f32.mrb[0].mxu0
    %v1043 = vpop.f32.mrb[0].mxu0
    %v1044 = vadd.f32 %v860, %v1043
    %v1045 = vpop.f32.mrb[0].mxu0
    %1046 = vmatprep.mubr.bf16.mxu0 %v822
    %1047 = vmatmul.mubr.bf16.gmra.mrb[0].mxu0 %v821
    %v1048 = vpop.f32.mrb[0].mxu0
    %v1049 = vadd.f32 %v860, %v1048
    %v1050 = vpop.f32.mrb[0].mxu0
    %v1051 = vpop.f32.mrb[0].mxu0
    %v1052 = vadd.f32 %v860, %v1051
    %v1053 = vpop.f32.mrb[0].mxu0
    %1054 = vdwg.mxu0
    %v1055 = vmax.f32 %v993, 0.0
    %v1056 = vmax.f32 %v996, 0.0
    %v1057 = vmax.f32 %v1001, 0.0
    %v1058 = vmax.f32 %v1004, 0.0
    %v1059 = vmax.f32 %v1009, 0.0
    %v1060 = vmax.f32 %v1012, 0.0
    %v1061 = vmax.f32 %v1017, 0.0
    %v1062 = vmax.f32 %v1020, 0.0
    %v1063 = vmax.f32 %v1025, 0.0
    %v1064 = vmax.f32 %v1028, 0.0
    %v1065 = vmax.f32 %v1033, 0.0
    %v1066 = vmax.f32 %v1036, 0.0
    %v1067 = vmax.f32 %v1041, 0.0
    %v1068 = vmax.f32 %v1044, 0.0
    %v1069 = vmax.f32 %v1049, 0.0
    %v1070 = vmax.f32 %v1052, 0.0
    %v1071 = vpack.c.bf16 %v1056, %v1055
    %v1072 = vpack.c.bf16 %v1058, %v1057
    %v1073 = vpack.c.bf16 %v1060, %v1059
    %v1074 = vpack.c.bf16 %v1062, %v1061
    %v1075 = vpack.c.bf16 %v1064, %v1063
    %v1076 = vpack.c.bf16 %v1066, %v1065
    %v1077 = vpack.c.bf16 %v1068, %v1067
    %v1078 = vpack.c.bf16 %v1070, %v1069
    %v1079 = vld [vmem:[%s5] sm:$0xf]
    %v1080 = vld [vmem:[%s5 + $0x4] sm:$0xf]
    %v1081 = vld [vmem:[%s5 + $0x8] sm:$0xf]
    %v1082 = vld [vmem:[%s5 + $0xc] sm:$0xf]
    %v1083 = vld [vmem:[%s5 + $0x10] sm:$0xf]
    %v1084 = vld [vmem:[%s5 + $0x14] sm:$0xf]
    %v1085 = vld [vmem:[%s5 + $0x18] sm:$0xf]
    %v1086 = vld [vmem:[%s5 + $0x1c] sm:$0xf]
    %v1087 = vld [vmem:[%s5 + $0x20] sm:$0xf]
    %v1088 = vld [vmem:[%s5 + $0x24] sm:$0xf]
    %v1089 = vld [vmem:[%s5 + $0x28] sm:$0xf]
    %v1090 = vld [vmem:[%s5 + $0x2c] sm:$0xf]
    %v1091 = vld [vmem:[%s5 + $0x30] sm:$0xf]
    %v1092 = vld [vmem:[%s5 + $0x34] sm:$0xf]
    %v1093 = vld [vmem:[%s5 + $0x38] sm:$0xf]
    %v1094 = vld [vmem:[%s5 + $0x3c] sm:$0xf]
    %v1095 = vld [vmem:[%s6] sm:$0x1]
    %v1097 = vlaneseq
    %v1098 = vshrl.u32 %v1097, 7
    %v1099 = vsub.s32 0, %v1098
    %v1100 = vrot.slane %v1095, %v1099
    %v1118 = vunpack.c.l.b16 %v1079
    %v1119 = vunpack.c.l.b16 %v1080
    %v1120 = vunpack.c.l.b16 %v1081
    %v1121 = vunpack.c.l.b16 %v1082
    %v1122 = vunpack.c.l.b16 %v1083
    %v1123 = vunpack.c.l.b16 %v1084
    %v1124 = vunpack.c.l.b16 %v1085
    %v1125 = vunpack.c.l.b16 %v1086
    %v1126 = vunpack.c.l.b16 %v1087
    %v1127 = vunpack.c.l.b16 %v1088
    %v1128 = vunpack.c.l.b16 %v1089
    %v1129 = vunpack.c.l.b16 %v1090
    %v1130 = vunpack.c.l.b16 %v1091
    %v1131 = vunpack.c.l.b16 %v1092
    %v1132 = vunpack.c.l.b16 %v1093
    %v1133 = vunpack.c.l.b16 %v1094
    %v1134 = vpack.c.b16 %v1119, %v1118
    %v1135 = vpack.c.b16 %v1121, %v1120
    %v1136 = vpack.c.b16 %v1123, %v1122
    %v1137 = vpack.c.b16 %v1125, %v1124
    %v1138 = vpack.c.b16 %v1127, %v1126
    %v1139 = vpack.c.b16 %v1129, %v1128
    %v1140 = vpack.c.b16 %v1131, %v1130
    %v1141 = vpack.c.b16 %v1133, %v1132
    %1150 = vmatprep.subr.bf16.mxu0 0
    %1151 = vmatpush1.bf16.msra.mxu0 %v1134
    %1152 = vmatprep.subr.bf16.mxu0 0
    %1153 = vmatpush1.bf16.msra.mxu0 %v1135
    %1154 = vmatprep.subr.bf16.mxu0 0
    %1155 = vmatpush1.bf16.msra.mxu0 %v1136
    %1156 = vmatprep.subr.bf16.mxu0 0
    %1157 = vmatpush1.bf16.msra.mxu0 %v1137
    %1158 = vmatprep.subr.bf16.mxu0 0
    %1159 = vmatpush1.bf16.msra.mxu0 %v1138
    %1160 = vmatprep.subr.bf16.mxu0 0
    %1161 = vmatpush1.bf16.msra.mxu0 %v1139
    %1162 = vmatprep.subr.bf16.mxu0 0
    %1163 = vmatpush1.bf16.msra.mxu0 %v1140
    %1164 = vmatprep.subr.bf16.mxu0 0
    %1165 = vmatpush1.bf16.msra.mxu0 %v1141
    %1166 = vmatprep.subr.bf16.mxu0 0
    %1167 = vmatpush1.bf16.msra.mxu0 0
    %1168 = vmatprep.subr.bf16.mxu0 0
    %1169 = vmatpush1.bf16.msra.mxu0 0
    %1170 = vmatprep.subr.bf16.mxu0 0
    %1171 = vmatpush1.bf16.msra.mxu0 0
    %1172 = vmatprep.subr.bf16.mxu0 0
    %1173 = vmatpush1.bf16.msra.mxu0 0
    %1174 = vmatprep.subr.bf16.mxu0 0
    %1175 = vmatpush1.bf16.msra.mxu0 0
    %1176 = vmatprep.subr.bf16.mxu0 0
    %1177 = vmatpush1.bf16.msra.mxu0 0
    %1178 = vmatprep.subr.bf16.mxu0 0
    %1179 = vmatpush1.bf16.msra.mxu0 0
    %1180 = vmatprep.subr.bf16.mxu0 0
    %1181 = vmatpush1.bf16.msra.mxu0 0
    %1182 = vmatprep.mubr.bf16.mxu0 0
    %1183 = vmatmul.mubr.bf16.gmra.mrb[0].mxu0 %v1071
    %v1184 = vpop.f32.mrb[0].mxu0
    %v1185 = vadd.f32 %v1100, %v1184
    %v1186 = vpop.f32.mrb[0].mxu0
    %v1187 = vpop.f32.mrb[0].mxu0
    %v1188 = vadd.f32 %v1100, %v1187
    %v1189 = vpop.f32.mrb[0].mxu0
    %1190 = vmatprep.mubr.bf16.mxu0 0
    %1191 = vmatmul.mubr.bf16.gmra.mrb[0].mxu0 %v1072
    %v1192 = vpop.f32.mrb[0].mxu0
    %v1193 = vadd.f32 %v1100, %v1192
    %v1194 = vpop.f32.mrb[0].mxu0
    %v1195 = vpop.f32.mrb[0].mxu0
    %v1196 = vadd.f32 %v1100, %v1195
    %v1197 = vpop.f32.mrb[0].mxu0
    %1198 = vmatprep.mubr.bf16.mxu0 0
    %1199 = vmatmul.mubr.bf16.gmra.mrb[0].mxu0 %v1073
    %v1200 = vpop.f32.mrb[0].mxu0
    %v1201 = vadd.f32 %v1100, %v1200
    %v1202 = vpop.f32.mrb[0].mxu0
    %v1203 = vpop.f32.mrb[0].mxu0
    %v1204 = vadd.f32 %v1100, %v1203
    %v1205 = vpop.f32.mrb[0].mxu0
    %1206 = vmatprep.mubr.bf16.mxu0 0
    %1207 = vmatmul.mubr.bf16.gmra.mrb[0].mxu0 %v1074
    %v1208 = vpop.f32.mrb[0].mxu0
    %v1209 = vadd.f32 %v1100, %v1208
    %v1210 = vpop.f32.mrb[0].mxu0
    %v1211 = vpop.f32.mrb[0].mxu0
    %v1212 = vadd.f32 %v1100, %v1211
    %v1213 = vpop.f32.mrb[0].mxu0
    %1214 = vmatprep.mubr.bf16.mxu0 0
    %1215 = vmatmul.mubr.bf16.gmra.mrb[0].mxu0 %v1075
    %v1216 = vpop.f32.mrb[0].mxu0
    %v1217 = vadd.f32 %v1100, %v1216
    %v1218 = vpop.f32.mrb[0].mxu0
    %v1219 = vpop.f32.mrb[0].mxu0
    %v1220 = vadd.f32 %v1100, %v1219
    %v1221 = vpop.f32.mrb[0].mxu0
    %1222 = vmatprep.mubr.bf16.mxu0 0
    %1223 = vmatmul.mubr.bf16.gmra.mrb[0].mxu0 %v1076
    %v1224 = vpop.f32.mrb[0].mxu0
    %v1225 = vadd.f32 %v1100, %v1224
    %v1226 = vpop.f32.mrb[0].mxu0
    %v1227 = vpop.f32.mrb[0].mxu0
    %v1228 = vadd.f32 %v1100, %v1227
    %v1229 = vpop.f32.mrb[0].mxu0
    %1230 = vmatprep.mubr.bf16.mxu0 0
    %1231 = vmatmul.mubr.bf16.gmra.mrb[0].mxu0 %v1077
    %v1232 = vpop.f32.mrb[0].mxu0
    %v1233 = vadd.f32 %v1100, %v1232
    %v1234 = vpop.f32.mrb[0].mxu0
    %v1235 = vpop.f32.mrb[0].mxu0
    %v1236 = vadd.f32 %v1100, %v1235
    %v1237 = vpop.f32.mrb[0].mxu0
    %1238 = vmatprep.mubr.bf16.mxu0 0
    %1239 = vmatmul.mubr.bf16.gmra.mrb[0].mxu0 %v1078
    %v1240 = vpop.f32.mrb[0].mxu0
    %v1241 = vadd.f32 %v1100, %v1240
    %v1242 = vpop.f32.mrb[0].mxu0
    %v1243 = vpop.f32.mrb[0].mxu0
    %v1244 = vadd.f32 %v1100, %v1243
    %v1245 = vpop.f32.mrb[0].mxu0
    %1246 = vdwg.mxu0
    %v1247 = vmax.f32 %v1185, 0.0
    %v1248 = vmax.f32 %v1188, 0.0
    %v1249 = vmax.f32 %v1193, 0.0
    %v1250 = vmax.f32 %v1196, 0.0
    %v1251 = vmax.f32 %v1201, 0.0
    %v1252 = vmax.f32 %v1204, 0.0
    %v1253 = vmax.f32 %v1209, 0.0
    %v1254 = vmax.f32 %v1212, 0.0
    %v1255 = vmax.f32 %v1217, 0.0
    %v1256 = vmax.f32 %v1220, 0.0
    %v1257 = vmax.f32 %v1225, 0.0
    %v1258 = vmax.f32 %v1228, 0.0
    %v1259 = vmax.f32 %v1233, 0.0
    %v1260 = vmax.f32 %v1236, 0.0
    %v1261 = vmax.f32 %v1241, 0.0
    %v1262 = vmax.f32 %v1244, 0.0
    %v1263 = vpack.c.bf16 %v1248, %v1247
    %v1264 = vpack.c.bf16 %v1250, %v1249
    %v1265 = vpack.c.bf16 %v1252, %v1251
    %v1266 = vpack.c.bf16 %v1254, %v1253
    %v1267 = vpack.c.bf16 %v1256, %v1255
    %v1268 = vpack.c.bf16 %v1258, %v1257
    %v1269 = vpack.c.bf16 %v1260, %v1259
    %v1270 = vpack.c.bf16 %v1262, %v1261
    %v1271 = vld [vmem:[#allocation4] sm:$0xf]
    %v1272 = vld [vmem:[#allocation4 + $0x4] sm:$0xf]
    %v1273 = vld [vmem:[#allocation4 + $0x8] sm:$0xf]
    %v1274 = vld [vmem:[#allocation4 + $0xc] sm:$0xf]
    %v1275 = vld [vmem:[#allocation4 + $0x10] sm:$0xf]
    %v1276 = vld [vmem:[#allocation4 + $0x14] sm:$0xf]
    %v1277 = vld [vmem:[#allocation4 + $0x18] sm:$0xf]
    %v1278 = vld [vmem:[#allocation4 + $0x1c] sm:$0xf]
    %v1279 = vld [vmem:[#allocation4 + $0x20] sm:$0xf]
    %v1280 = vld [vmem:[#allocation4 + $0x24] sm:$0xf]
    %v1281 = vld [vmem:[#allocation4 + $0x28] sm:$0xf]
    %v1282 = vld [vmem:[#allocation4 + $0x2c] sm:$0xf]
    %v1283 = vld [vmem:[#allocation4 + $0x30] sm:$0xf]
    %v1284 = vld [vmem:[#allocation4 + $0x34] sm:$0xf]
    %v1285 = vld [vmem:[#allocation4 + $0x38] sm:$0xf]
    %v1286 = vld [vmem:[#allocation4 + $0x3c] sm:$0xf]
    %v1287 = vld [vmem:[%s8] sm:$0x1]
    %v1289 = vlaneseq
    %v1290 = vshrl.u32 %v1289, 7
    %v1291 = vsub.s32 0, %v1290
    %v1292 = vrot.slane %v1287, %v1291
    %v1310 = vunpack.c.l.b16 %v1271
    %v1311 = vunpack.c.l.b16 %v1272
    %v1312 = vunpack.c.l.b16 %v1273
    %v1313 = vunpack.c.l.b16 %v1274
    %v1314 = vunpack.c.l.b16 %v1275
    %v1315 = vunpack.c.l.b16 %v1276
    %v1316 = vunpack.c.l.b16 %v1277
    %v1317 = vunpack.c.l.b16 %v1278
    %v1318 = vunpack.c.l.b16 %v1279
    %v1319 = vunpack.c.l.b16 %v1280
    %v1320 = vunpack.c.l.b16 %v1281
    %v1321 = vunpack.c.l.b16 %v1282
    %v1322 = vunpack.c.l.b16 %v1283
    %v1323 = vunpack.c.l.b16 %v1284
    %v1324 = vunpack.c.l.b16 %v1285
    %v1325 = vunpack.c.l.b16 %v1286
    %v1326 = vpack.c.b16 %v1311, %v1310
    %v1327 = vpack.c.b16 %v1313, %v1312
    %v1328 = vpack.c.b16 %v1315, %v1314
    %v1329 = vpack.c.b16 %v1317, %v1316
    %v1330 = vpack.c.b16 %v1319, %v1318
    %v1331 = vpack.c.b16 %v1321, %v1320
    %v1332 = vpack.c.b16 %v1323, %v1322
    %v1333 = vpack.c.b16 %v1325, %v1324
    %1342 = vmatprep.subr.bf16.mxu0 0
    %1343 = vmatpush1.bf16.msra.mxu0 %v1326
    %1344 = vmatprep.subr.bf16.mxu0 0
    %1345 = vmatpush1.bf16.msra.mxu0 %v1327
    %1346 = vmatprep.subr.bf16.mxu0 0
    %1347 = vmatpush1.bf16.msra.mxu0 %v1328
    %1348 = vmatprep.subr.bf16.mxu0 0
    %1349 = vmatpush1.bf16.msra.mxu0 %v1329
    %1350 = vmatprep.subr.bf16.mxu0 0
    %1351 = vmatpush1.bf16.msra.mxu0 %v1330
    %1352 = vmatprep.subr.bf16.mxu0 0
    %1353 = vmatpush1.bf16.msra.mxu0 %v1331
    %1354 = vmatprep.subr.bf16.mxu0 0
    %1355 = vmatpush1.bf16.msra.mxu0 %v1332
    %1356 = vmatprep.subr.bf16.mxu0 0
    %1357 = vmatpush1.bf16.msra.mxu0 %v1333
    %1358 = vmatprep.subr.bf16.mxu0 0
    %1359 = vmatpush1.bf16.msra.mxu0 0
    %1360 = vmatprep.subr.bf16.mxu0 0
    %1361 = vmatpush1.bf16.msra.mxu0 0
    %1362 = vmatprep.subr.bf16.mxu0 0
    %1363 = vmatpush1.bf16.msra.mxu0 0
    %1364 = vmatprep.subr.bf16.mxu0 0
    %1365 = vmatpush1.bf16.msra.mxu0 0
    %1366 = vmatprep.subr.bf16.mxu0 0
    %1367 = vmatpush1.bf16.msra.mxu0 0
    %1368 = vmatprep.subr.bf16.mxu0 0
    %1369 = vmatpush1.bf16.msra.mxu0 0
    %1370 = vmatprep.subr.bf16.mxu0 0
    %1371 = vmatpush1.bf16.msra.mxu0 0
    %1372 = vmatprep.subr.bf16.mxu0 0
    %1373 = vmatpush1.bf16.msra.mxu0 0
    %1374 = vmatprep.mubr.bf16.mxu0 0
    %1375 = vmatmul.mubr.bf16.gmra.mrb[0].mxu0 %v1263
    %v1376 = vpop.f32.mrb[0].mxu0
    %v1377 = vadd.f32 %v1292, %v1376
    %v1378 = vpop.f32.mrb[0].mxu0
    %v1379 = vpop.f32.mrb[0].mxu0
    %v1380 = vadd.f32 %v1292, %v1379
    %v1381 = vpop.f32.mrb[0].mxu0
    %1382 = vmatprep.mubr.bf16.mxu0 0
    %1383 = vmatmul.mubr.bf16.gmra.mrb[0].mxu0 %v1264
    %v1384 = vpop.f32.mrb[0].mxu0
    %v1385 = vadd.f32 %v1292, %v1384
    %v1386 = vpop.f32.mrb[0].mxu0
    %v1387 = vpop.f32.mrb[0].mxu0
    %v1388 = vadd.f32 %v1292, %v1387
    %v1389 = vpop.f32.mrb[0].mxu0
    %1390 = vmatprep.mubr.bf16.mxu0 0
    %1391 = vmatmul.mubr.bf16.gmra.mrb[0].mxu0 %v1265
    %v1392 = vpop.f32.mrb[0].mxu0
    %v1393 = vadd.f32 %v1292, %v1392
    %v1394 = vpop.f32.mrb[0].mxu0
    %v1395 = vpop.f32.mrb[0].mxu0
    %v1396 = vadd.f32 %v1292, %v1395
    %v1397 = vpop.f32.mrb[0].mxu0
    %1398 = vmatprep.mubr.bf16.mxu0 0
    %1399 = vmatmul.mubr.bf16.gmra.mrb[0].mxu0 %v1266
    %v1400 = vpop.f32.mrb[0].mxu0
    %v1401 = vadd.f32 %v1292, %v1400
    %v1402 = vpop.f32.mrb[0].mxu0
    %v1403 = vpop.f32.mrb[0].mxu0
    %v1404 = vadd.f32 %v1292, %v1403
    %v1405 = vpop.f32.mrb[0].mxu0
    %1406 = vmatprep.mubr.bf16.mxu0 0
    %1407 = vmatmul.mubr.bf16.gmra.mrb[0].mxu0 %v1267
    %v1408 = vpop.f32.mrb[0].mxu0
    %v1409 = vadd.f32 %v1292, %v1408
    %v1410 = vpop.f32.mrb[0].mxu0
    %v1411 = vpop.f32.mrb[0].mxu0
    %v1412 = vadd.f32 %v1292, %v1411
    %v1413 = vpop.f32.mrb[0].mxu0
    %1414 = vmatprep.mubr.bf16.mxu0 0
    %1415 = vmatmul.mubr.bf16.gmra.mrb[0].mxu0 %v1268
    %v1416 = vpop.f32.mrb[0].mxu0
    %v1417 = vadd.f32 %v1292, %v1416
    %v1418 = vpop.f32.mrb[0].mxu0
    %v1419 = vpop.f32.mrb[0].mxu0
    %v1420 = vadd.f32 %v1292, %v1419
    %v1421 = vpop.f32.mrb[0].mxu0
    %1422 = vmatprep.mubr.bf16.mxu0 0
    %1423 = vmatmul.mubr.bf16.gmra.mrb[0].mxu0 %v1269
    %v1424 = vpop.f32.mrb[0].mxu0
    %v1425 = vadd.f32 %v1292, %v1424
    %v1426 = vpop.f32.mrb[0].mxu0
    %v1427 = vpop.f32.mrb[0].mxu0
    %v1428 = vadd.f32 %v1292, %v1427
    %v1429 = vpop.f32.mrb[0].mxu0
    %1430 = vmatprep.mubr.bf16.mxu0 0
    %1431 = vmatmul.mubr.bf16.gmra.mrb[0].mxu0 %v1270
    %v1432 = vpop.f32.mrb[0].mxu0
    %v1433 = vadd.f32 %v1292, %v1432
    %v1434 = vpop.f32.mrb[0].mxu0
    %v1435 = vpop.f32.mrb[0].mxu0
    %v1436 = vadd.f32 %v1292, %v1435
    %v1437 = vpop.f32.mrb[0].mxu0
    %1438 = vdwg.mxu0
    %v1439 = vmax.f32 %v1377, 0.0
    %v1440 = vmax.f32 %v1380, 0.0
    %v1441 = vmax.f32 %v1385, 0.0
    %v1442 = vmax.f32 %v1388, 0.0
    %v1443 = vmax.f32 %v1393, 0.0
    %v1444 = vmax.f32 %v1396, 0.0
    %v1445 = vmax.f32 %v1401, 0.0
    %v1446 = vmax.f32 %v1404, 0.0
    %v1447 = vmax.f32 %v1409, 0.0
    %v1448 = vmax.f32 %v1412, 0.0
    %v1449 = vmax.f32 %v1417, 0.0
    %v1450 = vmax.f32 %v1420, 0.0
    %v1451 = vmax.f32 %v1425, 0.0
    %v1452 = vmax.f32 %v1428, 0.0
    %v1453 = vmax.f32 %v1433, 0.0
    %v1454 = vmax.f32 %v1436, 0.0
    %v1455 = vpack.c.bf16 %v1440, %v1439
    %v1456 = vpack.c.bf16 %v1442, %v1441
    %v1457 = vpack.c.bf16 %v1444, %v1443
    %v1458 = vpack.c.bf16 %v1446, %v1445
    %v1459 = vpack.c.bf16 %v1448, %v1447
    %v1460 = vpack.c.bf16 %v1450, %v1449
    %v1461 = vpack.c.bf16 %v1452, %v1451
    %v1462 = vpack.c.bf16 %v1454, %v1453
    %v1463 = vld [vmem:[#allocation6] sm:$0xf]
    %v1464 = vld [vmem:[#allocation6 + $0x4] sm:$0xf]
    %v1465 = vld [vmem:[#allocation6 + $0x8] sm:$0xf]
    %v1466 = vld [vmem:[#allocation6 + $0xc] sm:$0xf]
    %v1467 = vld [vmem:[#allocation6 + $0x10] sm:$0xf]
    %v1468 = vld [vmem:[#allocation6 + $0x14] sm:$0xf]
    %v1469 = vld [vmem:[#allocation6 + $0x18] sm:$0xf]
    %v1470 = vld [vmem:[#allocation6 + $0x1c] sm:$0xf]
    %v1471 = vld [vmem:[#allocation6 + $0x20] sm:$0xf]
    %v1472 = vld [vmem:[#allocation6 + $0x24] sm:$0xf]
    %v1473 = vld [vmem:[#allocation6 + $0x28] sm:$0xf]
    %v1474 = vld [vmem:[#allocation6 + $0x2c] sm:$0xf]
    %v1475 = vld [vmem:[#allocation6 + $0x30] sm:$0xf]
    %v1476 = vld [vmem:[#allocation6 + $0x34] sm:$0xf]
    %v1477 = vld [vmem:[#allocation6 + $0x38] sm:$0xf]
    %v1478 = vld [vmem:[#allocation6 + $0x3c] sm:$0xf]
    %v1479 = vld [vmem:[%s10] sm:$0x1]
    %v1481 = vlaneseq
    %v1482 = vshrl.u32 %v1481, 7
    %v1483 = vsub.s32 0, %v1482
    %v1484 = vrot.slane %v1479, %v1483
    %v1502 = vunpack.c.l.b16 %v1463
    %v1503 = vunpack.c.l.b16 %v1464
    %v1504 = vunpack.c.l.b16 %v1465
    %v1505 = vunpack.c.l.b16 %v1466
    %v1506 = vunpack.c.l.b16 %v1467
    %v1507 = vunpack.c.l.b16 %v1468
    %v1508 = vunpack.c.l.b16 %v1469
    %v1509 = vunpack.c.l.b16 %v1470
    %v1510 = vunpack.c.l.b16 %v1471
    %v1511 = vunpack.c.l.b16 %v1472
    %v1512 = vunpack.c.l.b16 %v1473
    %v1513 = vunpack.c.l.b16 %v1474
    %v1514 = vunpack.c.l.b16 %v1475
    %v1515 = vunpack.c.l.b16 %v1476
    %v1516 = vunpack.c.l.b16 %v1477
    %v1517 = vunpack.c.l.b16 %v1478
    %v1518 = vpack.c.b16 %v1503, %v1502
    %v1519 = vpack.c.b16 %v1505, %v1504
    %v1520 = vpack.c.b16 %v1507, %v1506
    %v1521 = vpack.c.b16 %v1509, %v1508
    %v1522 = vpack.c.b16 %v1511, %v1510
    %v1523 = vpack.c.b16 %v1513, %v1512
    %v1524 = vpack.c.b16 %v1515, %v1514
    %v1525 = vpack.c.b16 %v1517, %v1516
    %1534 = vmatprep.subr.bf16.mxu0 0
    %1535 = vmatpush1.bf16.msra.mxu0 %v1518
    %1536 = vmatprep.subr.bf16.mxu0 0
    %1537 = vmatpush1.bf16.msra.mxu0 %v1519
    %1538 = vmatprep.subr.bf16.mxu0 0
    %1539 = vmatpush1.bf16.msra.mxu0 %v1520
    %1540 = vmatprep.subr.bf16.mxu0 0
    %1541 = vmatpush1.bf16.msra.mxu0 %v1521
    %1542 = vmatprep.subr.bf16.mxu0 0
    %1543 = vmatpush1.bf16.msra.mxu0 %v1522
    %1544 = vmatprep.subr.bf16.mxu0 0
    %1545 = vmatpush1.bf16.msra.mxu0 %v1523
    %1546 = vmatprep.subr.bf16.mxu0 0
    %1547 = vmatpush1.bf16.msra.mxu0 %v1524
    %1548 = vmatprep.subr.bf16.mxu0 0
    %1549 = vmatpush1.bf16.msra.mxu0 %v1525
    %1550 = vmatprep.subr.bf16.mxu0 0
    %1551 = vmatpush1.bf16.msra.mxu0 0
    %1552 = vmatprep.subr.bf16.mxu0 0
    %1553 = vmatpush1.bf16.msra.mxu0 0
    %1554 = vmatprep.subr.bf16.mxu0 0
    %1555 = vmatpush1.bf16.msra.mxu0 0
    %1556 = vmatprep.subr.bf16.mxu0 0
    %1557 = vmatpush1.bf16.msra.mxu0 0
    %1558 = vmatprep.subr.bf16.mxu0 0
    %1559 = vmatpush1.bf16.msra.mxu0 0
    %1560 = vmatprep.subr.bf16.mxu0 0
    %1561 = vmatpush1.bf16.msra.mxu0 0
    %1562 = vmatprep.subr.bf16.mxu0 0
    %1563 = vmatpush1.bf16.msra.mxu0 0
    %1564 = vmatprep.subr.bf16.mxu0 0
    %1565 = vmatpush1.bf16.msra.mxu0 0
    %1566 = vmatprep.mubr.bf16.mxu0 0
    %1567 = vmatmul.mubr.bf16.gmra.mrb[0].mxu0 %v1455
    %v1568 = vpop.f32.mrb[0].mxu0
    %v1569 = vadd.f32 %v1484, %v1568
    %v1570 = vpop.f32.mrb[0].mxu0
    %v1571 = vpop.f32.mrb[0].mxu0
    %v1572 = vadd.f32 %v1484, %v1571
    %v1573 = vpop.f32.mrb[0].mxu0
    %1574 = vmatprep.mubr.bf16.mxu0 0
    %1575 = vmatmul.mubr.bf16.gmra.mrb[0].mxu0 %v1456
    %v1576 = vpop.f32.mrb[0].mxu0
    %v1577 = vadd.f32 %v1484, %v1576
    %v1578 = vpop.f32.mrb[0].mxu0
    %v1579 = vpop.f32.mrb[0].mxu0
    %v1580 = vadd.f32 %v1484, %v1579
    %v1581 = vpop.f32.mrb[0].mxu0
    %1582 = vmatprep.mubr.bf16.mxu0 0
    %1583 = vmatmul.mubr.bf16.gmra.mrb[0].mxu0 %v1457
    %v1584 = vpop.f32.mrb[0].mxu0
    %v1585 = vadd.f32 %v1484, %v1584
    %v1586 = vpop.f32.mrb[0].mxu0
    %v1587 = vpop.f32.mrb[0].mxu0
    %v1588 = vadd.f32 %v1484, %v1587
    %v1589 = vpop.f32.mrb[0].mxu0
    %1590 = vmatprep.mubr.bf16.mxu0 0
    %1591 = vmatmul.mubr.bf16.gmra.mrb[0].mxu0 %v1458
    %v1592 = vpop.f32.mrb[0].mxu0
    %v1593 = vadd.f32 %v1484, %v1592
    %v1594 = vpop.f32.mrb[0].mxu0
    %v1595 = vpop.f32.mrb[0].mxu0
    %v1596 = vadd.f32 %v1484, %v1595
    %v1597 = vpop.f32.mrb[0].mxu0
    %1598 = vmatprep.mubr.bf16.mxu0 0
    %1599 = vmatmul.mubr.bf16.gmra.mrb[0].mxu0 %v1459
    %v1600 = vpop.f32.mrb[0].mxu0
    %v1601 = vadd.f32 %v1484, %v1600
    %v1602 = vpop.f32.mrb[0].mxu0
    %v1603 = vpop.f32.mrb[0].mxu0
    %v1604 = vadd.f32 %v1484, %v1603
    %v1605 = vpop.f32.mrb[0].mxu0
    %1606 = vmatprep.mubr.bf16.mxu0 0
    %1607 = vmatmul.mubr.bf16.gmra.mrb[0].mxu0 %v1460
    %v1608 = vpop.f32.mrb[0].mxu0
    %v1609 = vadd.f32 %v1484, %v1608
    %v1610 = vpop.f32.mrb[0].mxu0
    %v1611 = vpop.f32.mrb[0].mxu0
    %v1612 = vadd.f32 %v1484, %v1611
    %v1613 = vpop.f32.mrb[0].mxu0
    %1614 = vmatprep.mubr.bf16.mxu0 0
    %1615 = vmatmul.mubr.bf16.gmra.mrb[0].mxu0 %v1461
    %v1616 = vpop.f32.mrb[0].mxu0
    %v1617 = vadd.f32 %v1484, %v1616
    %v1618 = vpop.f32.mrb[0].mxu0
    %v1619 = vpop.f32.mrb[0].mxu0
    %v1620 = vadd.f32 %v1484, %v1619
    %v1621 = vpop.f32.mrb[0].mxu0
    %1622 = vmatprep.mubr.bf16.mxu0 0
    %1623 = vmatmul.mubr.bf16.gmra.mrb[0].mxu0 %v1462
    %v1624 = vpop.f32.mrb[0].mxu0
    %v1625 = vadd.f32 %v1484, %v1624
    %v1626 = vpop.f32.mrb[0].mxu0
    %v1627 = vpop.f32.mrb[0].mxu0
    %v1628 = vadd.f32 %v1484, %v1627
    %v1629 = vpop.f32.mrb[0].mxu0
    %1630 = vdwg.mxu0
    %vm1631 = vcmask 64512
    %1632 = vst.msk [vmem:[%s11] sm:$0xff] %vm1631, %v1569
    %1633 = vst.msk [vmem:[%s11 + $0x8] sm:$0xff] %vm1631, %v1572
    %1634 = vst.msk [vmem:[%s11 + $0x10] sm:$0xff] %vm1631, %v1577
    %1635 = vst.msk [vmem:[%s11 + $0x18] sm:$0xff] %vm1631, %v1580
    %1636 = vst.msk [vmem:[%s11 + $0x20] sm:$0xff] %vm1631, %v1585
    %1637 = vst.msk [vmem:[%s11 + $0x28] sm:$0xff] %vm1631, %v1588
    %1638 = vst.msk [vmem:[%s11 + $0x30] sm:$0xff] %vm1631, %v1593
    %1639 = vst.msk [vmem:[%s11 + $0x38] sm:$0xff] %vm1631, %v1596
    %1640 = vst.msk [vmem:[%s11 + $0x40] sm:$0xff] %vm1631, %v1601
    %1641 = vst.msk [vmem:[%s11 + $0x48] sm:$0xff] %vm1631, %v1604
    %1642 = vst.msk [vmem:[%s11 + $0x50] sm:$0xff] %vm1631, %v1609
    %1643 = vst.msk [vmem:[%s11 + $0x58] sm:$0xff] %vm1631, %v1612
    %1644 = vst.msk [vmem:[%s11 + $0x60] sm:$0xff] %vm1631, %v1617
    %1645 = vst.msk [vmem:[%s11 + $0x68] sm:$0xff] %vm1631, %v1620
    %1646 = vst.msk [vmem:[%s11 + $0x70] sm:$0xff] %vm1631, %v1625
    %1647 = vst.msk [vmem:[%s11 + $0x78] sm:$0xff] %vm1631, %v1628
    // Predicated region
    $region58: #{model_2_forward.1} parent=1 // pred_check
      _
    $region59: #{model_2_forward.1} parent=1 // pred_check_branch
      %1649 = sbr.rel (0) target = $region61
    $region60: #{model_2_forward.1} parent=1 // pred_region
      _
    $region61: #{model_2_forward.1} parent=1 // pred_fallthru
      _
    // Predicated region
    $region62: #{model_2_forward.1} parent=1 // pred_check
      _
    $region63: #{model_2_forward.1} parent=1 // pred_check_branch
      %1651 = sbr.rel (0) target = $region65
    $region64: #{model_2_forward.1} parent=1 // pred_region
      _
    $region65: #{model_2_forward.1} parent=1 // pred_fallthru
      _
    %1652 = vsyncpa [#allocation3], 1
    %1653 = vsyncpa [#allocation5], 1

</llo_original>
